<compile_context>
chip_gen: v7x
topology: tpu7x:2x2x1
jax: 0.10.0
libtpu: 0.0.40
codegen_flags: <defaults>
</compile_context>

<pallas_src>
import math
from functools import partial

import jax
import jax.numpy as jnp
from jax.experimental import pallas as pl
from jax.experimental.pallas import tpu as pltpu

_BN_EPS = 1e-5                                   # BatchNorm1d eval with init stats
_COMBINE_SCALE = 1.0 / (3.0 * math.sqrt(1.0 + _BN_EPS))   # fold mean(3) + BN scale
_LANE = 128                                      # lane width -> lane-dense last dim
_MAX_ROW_TILE = 2048                             # ~5 MiB double-buffered @ D_pad=128 bf16
_VMEM_LIMIT = 32 * 1024 * 1024                   # explicit scoped-VMEM (>= v5e 16MiB default)


# ------------------------------- helpers -------------------------------------

def _round_up(n, m):
    return ((n + m - 1) // m) * m


def _pick_tile(n, max_tile=_MAX_ROW_TILE, min_tiles=1):
    """(tile, padded_n): tile % 8 == 0, padded_n % tile == 0, tile as large as
    possible under max_tile while aiming for >= min_tiles grid steps (v7x has two
    TensorCores; a single-step 'parallel' axis idles one of them)."""
    n8 = _round_up(max(n, 8), 8)
    tile = min(n8, _round_up(max_tile, 8))
    if min_tiles > 1 and n8 > 8:
        tile = min(tile, _round_up(-(-n8 // min_tiles), 8))
    return tile, _round_up(n8, tile)


def _pad2(a, rows, cols):
    return jnp.pad(a, ((0, rows - a.shape[0]), (0, cols - a.shape[1])))


# ----------------------------- Pallas kernels --------------------------------

def _linear_bias_kernel(x_ref, w_ref, b_ref, o_ref):
    # o = x @ w + b   (feature_reduction; lane-dense K and N)
    o_ref[...] = (
        jnp.dot(x_ref[...], w_ref[...], preferred_element_type=jnp.float32)
        + b_ref[...]
    )


def _edge_msg_kernel(src_ref, rel_ref, coal_ref, norm_ref, mask_ref,
                     wq_ref, wqsum_ref, wdir_ref, o_ref):
    # Fused per-edge pipeline ('mult' composition + 'mul' qualifier aggregation):
    #   qual         = coalesced @ W_q                (bf16 MXU, f32 acc)
    #   qual         = colsum(W_q) where the edge has no qualifiers (== ones @ W_q)
    #   comp         = x[src] * rel_all[edge_type] * qual * norm     (f32 VPU)
    #   msg          = comp @ W_dir                   (W_in / W_out by grid axis 0)
    qual = jnp.dot(coal_ref[...], wq_ref[...], preferred_element_type=jnp.float32)
    qual = jnp.where(mask_ref[...] > 0.0, qual, wqsum_ref[...])
    comp = (src_ref[...].astype(jnp.float32)
            * rel_ref[...].astype(jnp.float32)
            * qual) * norm_ref[...]
    o_ref[...] = jnp.dot(comp.astype(jnp.bfloat16), wdir_ref[...],
                         preferred_element_type=jnp.float32)


def _combine_kernel(ab_ref, x_ref, lr_ref, wl_ref, o_ref):
    # Fused node update:
    #   loop = (x * loop_rel) @ W_loop        (bf16 MXU, loop_rel broadcast in-kernel)
    #   o    = tanh( ((in_res + out_res) + loop) * 1/(3*sqrt(1+eps)) )   # eval-BN folded
    loop = jnp.dot(x_ref[...] * lr_ref[...], wl_ref[...],
                   preferred_element_type=jnp.float32)
    o_ref[...] = jnp.tanh((ab_ref[...] + loop) * _COMBINE_SCALE)


# ------------------------------ wrappers --------------------------------------

def pallas_linear(x, w, b, *, row_tile):
    """x:(M,K) @ w:(K,N) + b:(1,N); M % row_tile == 0 guaranteed by caller."""
    M, K = x.shape
    Nout = w.shape[1]
    return pl.pallas_call(
        _linear_bias_kernel,
        out_shape=jax.ShapeDtypeStruct((M, Nout), jnp.float32),
        grid=(M // row_tile,),
        in_specs=[
            pl.BlockSpec((row_tile, K), lambda i: (i, 0)),
            pl.BlockSpec((K, Nout), lambda i: (0, 0)),
            pl.BlockSpec((1, Nout), lambda i: (0, 0)),
        ],
        out_specs=pl.BlockSpec((row_tile, Nout), lambda i: (i, 0)),
        compiler_params=pltpu.CompilerParams(
            dimension_semantics=("parallel",), vmem_limit_bytes=_VMEM_LIMIT),
    )(x, w, b)


def pallas_edge_messages(src_x, rel_e, coal, norm, qmask,
                         w_q, wq_colsum, w_dir, *, edge_tile):
    """Fused per-edge message kernel over both directions.

    src_x/rel_e/coal : (2, E_pad, D_pad) bf16      norm/qmask : (2, E_pad, 1) f32
    w_q              : (D_pad, D_pad)   bf16       wq_colsum  : (1, D_pad)    f32
    w_dir            : (2, D_pad, D_pad) bf16  (axis 0 = in / out, selected per block)
    """
    _, E_pad, D_pad = src_x.shape
    T = E_pad // edge_tile
    edge_spec = pl.BlockSpec((None, edge_tile, D_pad), lambda d, t: (d, t, 0))
    col_spec = pl.BlockSpec((None, edge_tile, 1), lambda d, t: (d, t, 0))
    return pl.pallas_call(
        _edge_msg_kernel,
        out_shape=jax.ShapeDtypeStruct((2, E_pad, D_pad), jnp.float32),
        grid=(2, T),
        in_specs=[
            edge_spec, edge_spec, edge_spec,                       # src, rel, coalesced
            col_spec, col_spec,                                    # norm, has-qualifier mask
            pl.BlockSpec((D_pad, D_pad), lambda d, t: (0, 0)),     # W_q (VMEM-resident)
            pl.BlockSpec((1, D_pad), lambda d, t: (0, 0)),         # colsum(W_q)
            pl.BlockSpec((None, D_pad, D_pad), lambda d, t: (d, 0, 0)),  # W_in / W_out
        ],
        out_specs=edge_spec,
        compiler_params=pltpu.CompilerParams(
            dimension_semantics=("parallel", "parallel"),
            vmem_limit_bytes=_VMEM_LIMIT),
    )(src_x, rel_e, coal, norm, qmask, w_q, wq_colsum, w_dir)


def pallas_combine(ab, x, loop_rel, w_loop, *, node_tile):
    """Fused loop-path matmul + (in+out+loop)/3 + eval-BN + tanh, tiled over nodes."""
    N_pad, D_pad = ab.shape
    spec = pl.BlockSpec((node_tile, D_pad), lambda i: (i, 0))
    return pl.pallas_call(
        _combine_kernel,
        out_shape=jax.ShapeDtypeStruct((N_pad, D_pad), jnp.float32),
        grid=(N_pad // node_tile,),
        in_specs=[
            spec,                                            # in_res + out_res (f32)
            spec,                                            # x (bf16)
            pl.BlockSpec((1, D_pad), lambda i: (0, 0)),      # loop_rel (broadcast in-kernel)
            pl.BlockSpec((D_pad, D_pad), lambda i: (0, 0)),  # W_loop (VMEM-resident)
        ],
        out_specs=spec,
        compiler_params=pltpu.CompilerParams(
            dimension_semantics=("parallel",), vmem_limit_bytes=_VMEM_LIMIT),
    )(ab, x.astype(jnp.bfloat16), loop_rel.astype(jnp.bfloat16), w_loop)


# --------------------------- graph glue (plain JAX) ---------------------------

def compute_norm(edge_index, num_nodes):
    """D^{-1/2} A D^{-1/2} style edge normalisation (CompGCN/StarE)."""
    row, col = edge_index[0], edge_index[1]
    deg = jax.ops.segment_sum(
        jnp.ones(row.shape, jnp.float32), row, num_segments=num_nodes)
    deg_inv = jnp.where(deg > 0, deg ** -0.5, 0.0)
    return deg_inv[row] * deg_inv[col]


def stare_conv_layer(x, rel_embed, src_p, etype_p, tgt_flat, norm_p,
                     q_rel, q_ent, q_edge, qmask_p,
                     N_pad, E_pad, node_tile, edge_tile, p):
    D_pad = x.shape[1]
    rel_all = jnp.concatenate([rel_embed, p["loop_rel"]], axis=0)          # (R+1, D_pad)

    # TODO(synk): the data-dependent gathers (x[src], rel_all[edge_type], x[q_ent])
    # and the segment_sum scatter-adds stay in XLA; a scalar-prefetch accumulating
    # edge kernel over target-sorted edges would move them into Pallas.
    qual_emb = x[q_ent] * rel_all[q_rel]                                   # (2Q, D_pad)
    coal = jax.ops.segment_sum(qual_emb, q_edge, num_segments=2 * E_pad)
    coal = coal.reshape(2, E_pad, D_pad).astype(jnp.bfloat16)

    src_x = x[src_p].astype(jnp.bfloat16)                                  # (2, E_pad, D_pad)
    rel_e = rel_all[etype_p].astype(jnp.bfloat16)                          # (2, E_pad, D_pad)

    msgs = pallas_edge_messages(src_x, rel_e, coal, norm_p, qmask_p,
                                p["w_q"], p["wq_colsum"], p["w_dir"],
                                edge_tile=edge_tile)                       # (2, E_pad, D_pad)

    # one scatter pass gives in_res + out_res directly (padded edges add exact zeros)
    ab = jax.ops.segment_sum(msgs.reshape(2 * E_pad, D_pad), tgt_flat,
                             num_segments=N_pad)

    x_out = pallas_combine(ab, x, p["loop_rel"], p["w_loop"], node_tile=node_tile)

    # relation update: (R+1, D_pad) x (D_pad, D_pad) is tiny -> plain XLA dot
    rel_out = jnp.dot(rel_all, p["w_rel"], preferred_element_type=jnp.float32)[:-1]
    return x_out, rel_out


def stare_encoder_forward(x, edge_index, edge_type, quals, params):
    D = params["embedding_dim"]
    F_pad = params["f_pad"]
    N = x.shape[0]
    E = edge_index.shape[1] // 2
    Q = quals.shape[1] // 2

    node_tile, N_pad = _pick_tile(N, min_tiles=2)
    edge_tile, E_pad = _pick_tile(E, min_tiles=2)

    # feature_reduction on lane-dense, row-padded features (padded rows are never
    # gathered and are sliced off at the end)
    xp = jnp.pad(x, ((0, N_pad - N), (0, F_pad - x.shape[1])))
    x_emb = pallas_linear(xp, params["feat_w"], params["feat_b"], row_tile=node_tile)

    # ---- edge-side data laid out (2, E_pad, ...) ONCE (invariant across layers) ----
    tgt, src = edge_index[0], edge_index[1]

    def pad_dirwise(a):
        return jnp.pad(a.reshape(2, E), ((0, 0), (0, E_pad - E)))

    src_p = pad_dirwise(src)                      # padded edges gather node 0 (harmless)
    tgt_p = pad_dirwise(tgt)                      # padded edges scatter exact zeros
    etype_p = pad_dirwise(edge_type)
    in_norm = compute_norm(edge_index[:, :E], N)
    out_norm = compute_norm(edge_index[:, E:], N)
    norm_p = jnp.stack([jnp.pad(in_norm, (0, E_pad - E)),
                        jnp.pad(out_norm, (0, E_pad - E))], axis=0)[..., None]  # (2,E_pad,1)
    tgt_flat = tgt_p.reshape(-1)                  # (2*E_pad,)

    q_rel, q_ent = quals[0], quals[1]
    q_edge = jnp.concatenate([quals[2, :Q], quals[2, Q:] + E_pad])         # (2Q,)
    cnt = jax.ops.segment_sum(jnp.ones(q_edge.shape, jnp.float32), q_edge,
                              num_segments=2 * E_pad)
    qmask_p = (cnt > 0).astype(jnp.float32).reshape(2, E_pad, 1)

    rel = params["rel_embed"]                     # (R, D_pad)
    for p in params["layers"]:
        x_emb, rel = stare_conv_layer(
            x_emb, rel, src_p, etype_p, tgt_flat, norm_p,
            q_rel, q_ent, q_edge, qmask_p,
            N_pad, E_pad, node_tile, edge_tile, p)
        # self.drop1 (hid_drop) is identity in eval mode
    return x_emb[:N, :D], rel[:, :D]


# ------------------------------ parameter init --------------------------------

def xavier_normal(key, shape):
    fan_in, fan_out = shape[-2], shape[-1]
    std = math.sqrt(2.0 / (fan_in + fan_out))
    return std * jax.random.normal(key, shape, dtype=jnp.float32)


def make_params(key, feature_dim, embedding_dim, num_rel, num_layers):
    """True-shaped (module-equivalent) parameters."""
    keys = iter(jax.random.split(key, 8 + 8 * num_layers))
    params = {}
    params["feat_w"] = xavier_normal(next(keys), (feature_dim, embedding_dim))
    params["feat_b"] = 0.01 * jax.random.normal(next(keys), (1, embedding_dim), jnp.float32)
    rel = xavier_normal(next(keys), (num_rel, embedding_dim))
    params["rel_embed"] = rel.at[0].set(0.0)
    layers = []
    for _ in range(num_layers):
        layers.append({
            "w_in": xavier_normal(next(keys), (embedding_dim, embedding_dim)),
            "w_out": xavier_normal(next(keys), (embedding_dim, embedding_dim)),
            "w_loop": xavier_normal(next(keys), (embedding_dim, embedding_dim)),
            "w_rel": xavier_normal(next(keys), (embedding_dim, embedding_dim)),
            "w_q": xavier_normal(next(keys), (embedding_dim, embedding_dim)),
            "loop_rel": xavier_normal(next(keys), (1, embedding_dim)),
        })
    params["layers"] = layers
    return params


def prepare_params(params, feature_dim, embedding_dim):
    """Pad all embedding-dim axes to a multiple of 128 (lane-dense stores, full MXU
    K/N fill) and pre-cast the big per-edge weights to bf16.  Padded rows/cols are
    zero, so padded channels stay exactly 0 through every layer."""
    D_pad = _round_up(embedding_dim, _LANE)
    F_pad = _round_up(feature_dim, _LANE)
    R = params["rel_embed"].shape[0]
    out = {
        "embedding_dim": embedding_dim, "d_pad": D_pad, "f_pad": F_pad,
        "feat_w": _pad2(params["feat_w"], F_pad, D_pad),
        "feat_b": _pad2(params["feat_b"], 1, D_pad),
        "rel_embed": _pad2(params["rel_embed"], R, D_pad),
        "layers": [],
    }
    for p in params["layers"]:
        wq = _pad2(p["w_q"], D_pad, D_pad)
        out["layers"].append({
            "w_dir": jnp.stack([_pad2(p["w_in"], D_pad, D_pad),
                                _pad2(p["w_out"], D_pad, D_pad)], axis=0
                               ).astype(jnp.bfloat16),          # (2, D_pad, D_pad)
            "w_q": wq.astype(jnp.bfloat16),
            "wq_colsum": jnp.sum(wq, axis=0, keepdims=True),    # == ones @ W_q ('mul' fill)
            "w_loop": _pad2(p["w_loop"], D_pad, D_pad).astype(jnp.bfloat16),
            "w_rel": _pad2(p["w_rel"], D_pad, D_pad),
            "loop_rel": _pad2(p["loop_rel"], 1, D_pad),
        })
    return out


# ----------------------------------- main --------------------------------------

if __name__ == "__main__":
    N = 64        # num entities
    F = 48        # feature_dim (!= embedding_dim so feature_reduction runs)
    D = 32        # embedding_dim
    R = 10        # num relations (row 0 is padding)
    E_HALF = 40   # edges per direction (total edge list length = 2*E_HALF)
    Q_HALF = 8    # qualifiers per direction
    NUM_LAYERS = 2

    key = jax.random.PRNGKey(0)
    k_x, k_p, k_e0, k_e1, k_t, k_qr, k_qe, k_qi = jax.random.split(key, 8)

    # node features (Parameter x), row 0 zeroed as in the module
    x = xavier_normal(k_x, (N, F)).at[0].set(0.0)

    params = prepare_params(make_params(k_p, F, D, R, NUM_LAYERS), F, D)

    # graph connectivity: first half = "in" edges, second half = "out" edges
    src = jax.random.randint(k_e0, (2 * E_HALF,), 0, N, dtype=jnp.int32)
    dst = jax.random.randint(k_e1, (2 * E_HALF,), 0, N, dtype=jnp.int32)
    edge_index = jnp.stack([dst, src], axis=0)                         # (2, 2E): [target, source]
    edge_type = jax.random.randint(k_t, (2 * E_HALF,), 1, R, dtype=jnp.int32)

    qual_rel = jax.random.randint(k_qr, (2 * Q_HALF,), 1, R, dtype=jnp.int32)
    qual_ent = jax.random.randint(k_qe, (2 * Q_HALF,), 0, N, dtype=jnp.int32)
    qual_edge = jax.random.randint(k_qi, (2 * Q_HALF,), 0, E_HALF, dtype=jnp.int32)
    qualifier_index = jnp.stack([qual_rel, qual_ent, qual_edge], axis=0)  # (3, 2Q)

    fwd = jax.jit(partial(stare_encoder_forward, params=params))
    ent_out, rel_out = fwd(x, edge_index, edge_type, qualifier_index)
    jax.block_until_ready((ent_out, rel_out))

    assert ent_out.shape == (N, D) and rel_out.shape == (R, D)
    assert bool(jnp.all(jnp.isfinite(ent_out))) and bool(jnp.all(jnp.isfinite(rel_out)))
    print("KERNEL_OK")
</pallas_src>

<mosaic_0001>
module attributes {stable_mosaic.version = 11 : i64} {
  func.func private @main(%arg0: i32) attributes {dimension_semantics = [#tpu.dimension_semantics<core_parallel>], iteration_bounds = array<i64: 2>, tpu.core_type = #tpu.core_type<sc_scalar_subcore>, window_params = []} {
    return
  }
}

module attributes {stable_mosaic.version = 11 : i64} {
  func.func private @main(%arg0: i32) attributes {dimension_semantics = [#tpu.dimension_semantics<core_parallel>], iteration_bounds = array<i64: 2>, tpu.core_type = #tpu.core_type<sc_scalar_subcore>, window_params = []} {
    return
  }
}

module attributes {stable_mosaic.version = 11 : i64} {
  func.func @_linear_bias_kernel(%arg0: i32, %arg1: memref<32x128xf32, #tpu.memory_space<vmem>>, %arg2: memref<128x128xf32, #tpu.memory_space<vmem>>, %arg3: memref<1x128xf32, #tpu.memory_space<vmem>>, %arg4: memref<32x128xf32, #tpu.memory_space<vmem>>) attributes {dimension_semantics = [#tpu.dimension_semantics<parallel>], iteration_bounds = array<i64: 2>, scalar_prefetch = 0 : i64, scratch_operands = 0 : i64, tpu.core_type = #tpu.core_type<tc>, window_params = [{transform_indices = @transform_0, window_bounds = array<i64: 32, 128>}, {pipeline_mode = #tpu.pipeline_mode<synchronous>, transform_indices = @transform_1, window_bounds = array<i64: 128, 128>}, {pipeline_mode = #tpu.pipeline_mode<synchronous>, transform_indices = @transform_2, window_bounds = array<i64: 1, 128>}, {transform_indices = @transform_3, window_bounds = array<i64: 32, 128>}]} {
    %c0 = arith.constant 0 : index
    %c0_0 = arith.constant 0 : index
    %0 = vector.load %arg1[%c0, %c0_0] : memref<32x128xf32, #tpu.memory_space<vmem>>, vector<32x128xf32>
    %c0_1 = arith.constant 0 : index
    %c0_2 = arith.constant 0 : index
    %1 = vector.load %arg2[%c0_1, %c0_2] : memref<128x128xf32, #tpu.memory_space<vmem>>, vector<128x128xf32>
    %cst = arith.constant dense<0.000000e+00> : vector<32x128xf32>
    %2 = tpu.matmul %0, %1, %cst {dimension_numbers = #tpu.dot_dimension_numbers<[1], [0], [0], [1], [0, 0, 1, 1], [], []>} : vector<32x128xf32>, vector<128x128xf32>, vector<32x128xf32> -> vector<32x128xf32>
    %c0_3 = arith.constant 0 : index
    %c0_4 = arith.constant 0 : index
    %3 = vector.load %arg3[%c0_3, %c0_4] : memref<1x128xf32, #tpu.memory_space<vmem>>, vector<1x128xf32>
    %4 = vector.broadcast %3 : vector<1x128xf32> to vector<32x128xf32>
    %5 = arith.addf %2, %4 : vector<32x128xf32>
    %c0_5 = arith.constant 0 : index
    %c0_6 = arith.constant 0 : index
    %6 = vector.load %arg4[%c0_5, %c0_6] : memref<32x128xf32, #tpu.memory_space<vmem>>, vector<32x128xf32>
    tpu.vector_store %arg4[%c0_5, %c0_6], %5 {strides = array<i32>} : memref<32x128xf32, #tpu.memory_space<vmem>>, vector<32x128xf32>,
    return
  }
  func.func @transform_0(%arg0: i32) -> (i32, i32) {
    %c0_i32 = arith.constant 0 : i32
    %c0_i32_0 = arith.constant 0 : i32
    return %arg0, %c0_i32 : i32, i32
  }
  func.func @transform_1(%arg0: i32) -> (i32, i32) {
    %c0_i32 = arith.constant 0 : i32
    %c0_i32_0 = arith.constant 0 : i32
    %c0_i32_1 = arith.constant 0 : i32
    return %c0_i32, %c0_i32_0 : i32, i32
  }
  func.func @transform_2(%arg0: i32) -> (i32, i32) {
    %c0_i32 = arith.constant 0 : i32
    %c0_i32_0 = arith.constant 0 : i32
    %c0_i32_1 = arith.constant 0 : i32
    return %c0_i32, %c0_i32_0 : i32, i32
  }
  func.func @transform_3(%arg0: i32) -> (i32, i32) {
    %c0_i32 = arith.constant 0 : i32
    %c0_i32_0 = arith.constant 0 : i32
    return %arg0, %c0_i32 : i32, i32
  }
}

module attributes {stable_mosaic.version = 11 : i64} {
  func.func @_edge_msg_kernel(%arg0: i32, %arg1: i32, %arg2: memref<1x24x128xbf16, #tpu.memory_space<vmem>>, %arg3: memref<1x24x128xbf16, #tpu.memory_space<vmem>>, %arg4: memref<1x24x128xbf16, #tpu.memory_space<vmem>>, %arg5: memref<1x24x1xf32, #tpu.memory_space<vmem>>, %arg6: memref<1x24x1xf32, #tpu.memory_space<vmem>>, %arg7: memref<128x128xbf16, #tpu.memory_space<vmem>>, %arg8: memref<1x128xf32, #tpu.memory_space<vmem>>, %arg9: memref<1x128x128xbf16, #tpu.memory_space<vmem>>, %arg10: memref<1x24x128xf32, #tpu.memory_space<vmem>>) attributes {dimension_semantics = [#tpu.dimension_semantics<parallel>, #tpu.dimension_semantics<parallel>], iteration_bounds = array<i64: 2, 2>, scalar_prefetch = 0 : i64, scratch_operands = 0 : i64, tpu.core_type = #tpu.core_type<tc>, window_params = [{transform_indices = @transform_0, window_bounds = array<i64: 1, 24, 128>}, {transform_indices = @transform_1, window_bounds = array<i64: 1, 24, 128>}, {transform_indices = @transform_2, window_bounds = array<i64: 1, 24, 128>}, {transform_indices = @transform_3, window_bounds = array<i64: 1, 24, 1>}, {transform_indices = @transform_4, window_bounds = array<i64: 1, 24, 1>}, {pipeline_mode = #tpu.pipeline_mode<synchronous>, transform_indices = @transform_5, window_bounds = array<i64: 128, 128>}, {pipeline_mode = #tpu.pipeline_mode<synchronous>, transform_indices = @transform_6, window_bounds = array<i64: 1, 128>}, {transform_indices = @transform_7, window_bounds = array<i64: 1, 128, 128>}, {transform_indices = @transform_8, window_bounds = array<i64: 1, 24, 128>}]} {
    %c0 = arith.constant 0 : index
    %c0_0 = arith.constant 0 : index
    %c0_1 = arith.constant 0 : index
    %0 = vector.load %arg4[%c0, %c0_0, %c0_1] : memref<1x24x128xbf16, #tpu.memory_space<vmem>>, vector<1x24x128xbf16>
    %1 = vector.shape_cast %0 : vector<1x24x128xbf16> to vector<24x128xbf16>
    %c0_2 = arith.constant 0 : index
    %c0_3 = arith.constant 0 : index
    %2 = vector.load %arg7[%c0_2, %c0_3] : memref<128x128xbf16, #tpu.memory_space<vmem>>, vector<128x128xbf16>
    %cst = arith.constant dense<0.000000e+00> : vector<24x128xf32>
    %3 = tpu.matmul %1, %2, %cst {dimension_numbers = #tpu.dot_dimension_numbers<[1], [0], [0], [1], [0, 0, 1, 1], [], []>} : vector<24x128xbf16>, vector<128x128xbf16>, vector<24x128xf32> -> vector<24x128xf32>
    %c0_4 = arith.constant 0 : index
    %c0_5 = arith.constant 0 : index
    %c0_6 = arith.constant 0 : index
    %4 = vector.load %arg6[%c0_4, %c0_5, %c0_6] : memref<1x24x1xf32, #tpu.memory_space<vmem>>, vector<1x24x1xf32>
    %5 = vector.shape_cast %4 : vector<1x24x1xf32> to vector<24x1xf32>
    %cst_7 = arith.constant 0.000000e+00 : f32
    %6 = vector.broadcast %cst_7 : f32 to vector<24x1xf32>
    %7 = arith.cmpf ogt, %5, %6 : vector<24x1xf32>
    %c0_8 = arith.constant 0 : index
    %c0_9 = arith.constant 0 : index
    %8 = vector.load %arg8[%c0_8, %c0_9] : memref<1x128xf32, #tpu.memory_space<vmem>>, vector<1x128xf32>
    %9 = vector.shape_cast %7 : vector<24x1xi1> to vector<24x1xi1>
    %10 = vector.broadcast %9 : vector<24x1xi1> to vector<24x128xi1>
    %11 = vector.shape_cast %8 : vector<1x128xf32> to vector<1x128xf32>
    %12 = vector.broadcast %11 : vector<1x128xf32> to vector<24x128xf32>
    %13 = arith.select %10, %3, %12 : vector<24x128xi1>, vector<24x128xf32>
    %c0_10 = arith.constant 0 : index
    %c0_11 = arith.constant 0 : index
    %c0_12 = arith.constant 0 : index
    %14 = vector.load %arg2[%c0_10, %c0_11, %c0_12] : memref<1x24x128xbf16, #tpu.memory_space<vmem>>, vector<1x24x128xbf16>
    %15 = vector.shape_cast %14 : vector<1x24x128xbf16> to vector<24x128xbf16>
    %16 = arith.extf %15 : vector<24x128xbf16> to vector<24x128xf32>
    %c0_13 = arith.constant 0 : index
    %c0_14 = arith.constant 0 : index
    %c0_15 = arith.constant 0 : index
    %17 = vector.load %arg3[%c0_13, %c0_14, %c0_15] : memref<1x24x128xbf16, #tpu.memory_space<vmem>>, vector<1x24x128xbf16>
    %18 = vector.shape_cast %17 : vector<1x24x128xbf16> to vector<24x128xbf16>
    %19 = arith.extf %18 : vector<24x128xbf16> to vector<24x128xf32>
    %20 = arith.mulf %16, %19 : vector<24x128xf32>
    %21 = arith.mulf %20, %13 : vector<24x128xf32>
    %c0_16 = arith.constant 0 : index
    %c0_17 = arith.constant 0 : index
    %c0_18 = arith.constant 0 : index
    %22 = vector.load %arg5[%c0_16, %c0_17, %c0_18] : memref<1x24x1xf32, #tpu.memory_space<vmem>>, vector<1x24x1xf32>
    %23 = vector.shape_cast %22 : vector<1x24x1xf32> to vector<24x1xf32>
    %24 = vector.broadcast %23 : vector<24x1xf32> to vector<24x128xf32>
    %25 = arith.mulf %21, %24 : vector<24x128xf32>
    %26 = arith.truncf %25 : vector<24x128xf32> to vector<24x128xbf16>
    %c0_19 = arith.constant 0 : index
    %c0_20 = arith.constant 0 : index
    %c0_21 = arith.constant 0 : index
    %27 = vector.load %arg9[%c0_19, %c0_20, %c0_21] : memref<1x128x128xbf16, #tpu.memory_space<vmem>>, vector<1x128x128xbf16>
    %28 = vector.shape_cast %27 : vector<1x128x128xbf16> to vector<128x128xbf16>
    %cst_22 = arith.constant dense<0.000000e+00> : vector<24x128xf32>
    %29 = tpu.matmul %26, %28, %cst_22 {dimension_numbers = #tpu.dot_dimension_numbers<[1], [0], [0], [1], [0, 0, 1, 1], [], []>} : vector<24x128xbf16>, vector<128x128xbf16>, vector<24x128xf32> -> vector<24x128xf32>
    %c0_23 = arith.constant 0 : index
    %c0_24 = arith.constant 0 : index
    %c0_25 = arith.constant 0 : index
    %30 = vector.load %arg10[%c0_23, %c0_24, %c0_25] : memref<1x24x128xf32, #tpu.memory_space<vmem>>, vector<1x24x128xf32>
    %31 = vector.shape_cast %30 : vector<1x24x128xf32> to vector<24x128xf32>
    %32 = vector.shape_cast %29 : vector<24x128xf32> to vector<1x24x128xf32>
    tpu.vector_store %arg10[%c0_23, %c0_24, %c0_25], %32 {strides = array<i32>} : memref<1x24x128xf32, #tpu.memory_space<vmem>>, vector<1x24x128xf32>,
    return
  }
  func.func @transform_0(%arg0: i32, %arg1: i32) -> (i32, i32, i32) {
    %c0_i32 = arith.constant 0 : i32
    %c0_i32_0 = arith.constant 0 : i32
    return %arg0, %arg1, %c0_i32 : i32, i32, i32
  }
  func.func @transform_1(%arg0: i32, %arg1: i32) -> (i32, i32, i32) {
    %c0_i32 = arith.constant 0 : i32
    %c0_i32_0 = arith.constant 0 : i32
    return %arg0, %arg1, %c0_i32 : i32, i32, i32
  }
  func.func @transform_2(%arg0: i32, %arg1: i32) -> (i32, i32, i32) {
    %c0_i32 = arith.constant 0 : i32
    %c0_i32_0 = arith.constant 0 : i32
    return %arg0, %arg1, %c0_i32 : i32, i32, i32
  }
  func.func @transform_3(%arg0: i32, %arg1: i32) -> (i32, i32, i32) {
    %c0_i32 = arith.constant 0 : i32
    %c0_i32_0 = arith.constant 0 : i32
    return %arg0, %arg1, %c0_i32 : i32, i32, i32
  }
  func.func @transform_4(%arg0: i32, %arg1: i32) -> (i32, i32, i32) {
    %c0_i32 = arith.constant 0 : i32
    %c0_i32_0 = arith.constant 0 : i32
    return %arg0, %arg1, %c0_i32 : i32, i32, i32
  }
  func.func @transform_5(%arg0: i32, %arg1: i32) -> (i32, i32) {
    %c0_i32 = arith.constant 0 : i32
    %c0_i32_0 = arith.constant 0 : i32
    %c0_i32_1 = arith.constant 0 : i32
    return %c0_i32, %c0_i32_0 : i32, i32
  }
  func.func @transform_6(%arg0: i32, %arg1: i32) -> (i32, i32) {
    %c0_i32 = arith.constant 0 : i32
    %c0_i32_0 = arith.constant 0 : i32
    %c0_i32_1 = arith.constant 0 : i32
    return %c0_i32, %c0_i32_0 : i32, i32
  }
  func.func @transform_7(%arg0: i32, %arg1: i32) -> (i32, i32, i32) {
    %c0_i32 = arith.constant 0 : i32
    %c0_i32_0 = arith.constant 0 : i32
    %c0_i32_1 = arith.constant 0 : i32
    return %arg0, %c0_i32, %c0_i32_0 : i32, i32, i32
  }
  func.func @transform_8(%arg0: i32, %arg1: i32) -> (i32, i32, i32) {
    %c0_i32 = arith.constant 0 : i32
    %c0_i32_0 = arith.constant 0 : i32
    return %arg0, %arg1, %c0_i32 : i32, i32, i32
  }
}

module attributes {stable_mosaic.version = 11 : i64} {
  func.func @_combine_kernel(%arg0: i32, %arg1: memref<32x128xf32, #tpu.memory_space<vmem>>, %arg2: memref<32x128xbf16, #tpu.memory_space<vmem>>, %arg3: memref<1x128xbf16, #tpu.memory_space<vmem>>, %arg4: memref<128x128xbf16, #tpu.memory_space<vmem>>, %arg5: memref<32x128xf32, #tpu.memory_space<vmem>>) attributes {dimension_semantics = [#tpu.dimension_semantics<parallel>], iteration_bounds = array<i64: 2>, scalar_prefetch = 0 : i64, scratch_operands = 0 : i64, tpu.core_type = #tpu.core_type<tc>, window_params = [{transform_indices = @transform_0, window_bounds = array<i64: 32, 128>}, {transform_indices = @transform_1, window_bounds = array<i64: 32, 128>}, {pipeline_mode = #tpu.pipeline_mode<synchronous>, transform_indices = @transform_2, window_bounds = array<i64: 1, 128>}, {pipeline_mode = #tpu.pipeline_mode<synchronous>, transform_indices = @transform_3, window_bounds = array<i64: 128, 128>}, {transform_indices = @transform_4, window_bounds = array<i64: 32, 128>}]} {
    %c0 = arith.constant 0 : index
    %c0_0 = arith.constant 0 : index
    %0 = vector.load %arg2[%c0, %c0_0] : memref<32x128xbf16, #tpu.memory_space<vmem>>, vector<32x128xbf16>
    %c0_1 = arith.constant 0 : index
    %c0_2 = arith.constant 0 : index
    %1 = vector.load %arg3[%c0_1, %c0_2] : memref<1x128xbf16, #tpu.memory_space<vmem>>, vector<1x128xbf16>
    %2 = vector.broadcast %1 : vector<1x128xbf16> to vector<32x128xbf16>
    %3 = arith.mulf %0, %2 : vector<32x128xbf16>
    %c0_3 = arith.constant 0 : index
    %c0_4 = arith.constant 0 : index
    %4 = vector.load %arg4[%c0_3, %c0_4] : memref<128x128xbf16, #tpu.memory_space<vmem>>, vector<128x128xbf16>
    %cst = arith.constant dense<0.000000e+00> : vector<32x128xf32>
    %5 = tpu.matmul %3, %4, %cst {dimension_numbers = #tpu.dot_dimension_numbers<[1], [0], [0], [1], [0, 0, 1, 1], [], []>} : vector<32x128xbf16>, vector<128x128xbf16>, vector<32x128xf32> -> vector<32x128xf32>
    %c0_5 = arith.constant 0 : index
    %c0_6 = arith.constant 0 : index
    %6 = vector.load %arg1[%c0_5, %c0_6] : memref<32x128xf32, #tpu.memory_space<vmem>>, vector<32x128xf32>
    %7 = arith.addf %6, %5 : vector<32x128xf32>
    %cst_7 = arith.constant 0.333331674 : f32
    %8 = vector.broadcast %cst_7 : f32 to vector<32x128xf32>
    %9 = arith.mulf %7, %8 : vector<32x128xf32>
    %10 = math.tanh %9 : vector<32x128xf32>
    %c0_8 = arith.constant 0 : index
    %c0_9 = arith.constant 0 : index
    %11 = vector.load %arg5[%c0_8, %c0_9] : memref<32x128xf32, #tpu.memory_space<vmem>>, vector<32x128xf32>
    tpu.vector_store %arg5[%c0_8, %c0_9], %10 {strides = array<i32>} : memref<32x128xf32, #tpu.memory_space<vmem>>, vector<32x128xf32>,
    return
  }
  func.func @transform_0(%arg0: i32) -> (i32, i32) {
    %c0_i32 = arith.constant 0 : i32
    %c0_i32_0 = arith.constant 0 : i32
    return %arg0, %c0_i32 : i32, i32
  }
  func.func @transform_1(%arg0: i32) -> (i32, i32) {
    %c0_i32 = arith.constant 0 : i32
    %c0_i32_0 = arith.constant 0 : i32
    return %arg0, %c0_i32 : i32, i32
  }
  func.func @transform_2(%arg0: i32) -> (i32, i32) {
    %c0_i32 = arith.constant 0 : i32
    %c0_i32_0 = arith.constant 0 : i32
    %c0_i32_1 = arith.constant 0 : i32
    return %c0_i32, %c0_i32_0 : i32, i32
  }
  func.func @transform_3(%arg0: i32) -> (i32, i32) {
    %c0_i32 = arith.constant 0 : i32
    %c0_i32_0 = arith.constant 0 : i32
    %c0_i32_1 = arith.constant 0 : i32
    return %c0_i32, %c0_i32_0 : i32, i32
  }
  func.func @transform_4(%arg0: i32) -> (i32, i32) {
    %c0_i32 = arith.constant 0 : i32
    %c0_i32_0 = arith.constant 0 : i32
    return %arg0, %c0_i32 : i32, i32
  }
}

</mosaic_0001>

<llo_original>
// kernel: squeeze.13
$region0: #{squeeze.13}
  %s0 = inlined_call_operand.vmem [shape: s32[80], index: 0, kind: input, shape index: {}]
  %s1 = inlined_call_operand.vmem [shape: s32[2,40], index: 1, kind: output, shape index: {}]
  $region1: #{squeeze.13} parent=0
    #allocation0 [shape = 'u8[4096]{0}', space=vmem, size = 0x1000, scoped, tag = 'scoped mem for output reshape']
    #allocation1 [shape = 'u8[4096]{0}', space=vmem, size = 0x1000, scoped, tag = 'scoped mem for input reshape']
    %s3 = sshllo.u32 0, 1
    %v4 = vld [vmem:[%s0] sm:%s3]
    %5 = vst [vmem:[#allocation1] sm:%s3] %v4
    %v6 = vld [vmem:[#allocation1] sm:$0x1]
    %vm7 = vcmask 326656
    %8 = vst.msk [vmem:[#allocation0] sm:$0x1] %vm7, %v6
    %v9 = vld [vmem:[#allocation1] sm:$0x1]
    %10 = vrot.lane.b32.xlu0 %v9, 88
    %v11 = vpop.permute.xlu0 %10
    %vm12 = vcmask 326656
    %s13 = scalar_lea.vmem [#allocation0], 1
    %14 = vst.msk [vmem:[%s13] sm:$0x1] %vm12, %v11
    %s16 = sshllo.u32 0, 2
    %v18 = vld [vmem:[#allocation0] sm:%s16]
    %s19 = sshllo.u32 0, 2
    %20 = vst [vmem:[%s1] sm:%s19] %v18

// kernel: mul.5
$region0: #{mul.5}
  #allocation0 [shape = 's32[1]{0}', space=sflag, size = 0x4, scoped, tag = 'scoped memory for mul.5']
  %s0 = inlined_call_operand.vmem [shape: f32[40], index: 0, kind: input, shape index: {}]
  %s1 = inlined_call_operand.vmem [shape: f32[40], index: 1, kind: input, shape index: {}]
  %s2 = inlined_call_operand.vmem [shape: f32[40], index: 2, kind: output, shape index: {}]
  %v3 = vld [vmem:[%s0] sm:$0x1]
  %v4 = vld [vmem:[%s1] sm:$0x1]
  %5 = xla_tuple %v3, %v4
  %6 = xla_tuple %5
  %v7 = vmul.f32 %v3, %v4
  %8 = xla_tuple %v7
  %9 = vst [vmem:[%s2] sm:$0x1] %v7

// kernel: stare_encoder_forward.5
$region0: #{stare_encoder_forward.5}
  #allocation0 [shape = 'u32[]', space=smem, size = 0x4, offset = 0x4, fixed_abs, tag = 'smem constant byte address 0x4 - core index']
  #allocation1 [shape = 'u32[144,128]{1,0:T(1,128)}', space=vmem, size = 0x12000, scoped, tag = 'internal scratch']
  %s0 = inlined_call_operand.vmem [shape: f32[64,128], index: 0, kind: input, shape index: {}]
  %s1 = inlined_call_operand.vmem [shape: f32[128,128], index: 1, kind: input, shape index: {}]
  %s2 = inlined_call_operand.vmem [shape: f32[1,128], index: 2, kind: input, shape index: {}]
  %s3 = inlined_call_operand.vmem [shape: f32[64,128], index: 3, kind: output, shape index: {}]
  %s4 = sld [smem:[#allocation0]]
  $region45: #{stare_encoder_forward.5} parent=0
    _
  %s6 = ssub.s32 1, %s4
  %s7 = scalar_select 0, %s6, %s4
  loop: start=0, step=1, limit=4
  $region2: #{stare_encoder_forward.5} parent=0 // loop_pre_header
    _
  $region3: #{stare_encoder_forward.5} parent=0 // loop_header
    %s9 = sphi 0, %s13
    %p10 = scmp.ge.s32.totalorder %s9, 4
    %s19 = sphi 0, %s21
    %s22 = sphi 0, %s19
    %s23 = sphi 0, %s22
    %s39 = sphi 0, %s23
    %s43 = sphi 0, %s43
    %s45 = sphi 0, %s43
    %s46 = sphi 0, %s45
    %s60 = sphi 0, %s46
    %s64 = sphi 0, %s64
    %s66 = sphi 0, %s64
    %s67 = sphi 0, %s66
    %s81 = sphi 0, %s67
    %s87 = sphi 0, %s89
    %s90 = sphi 0, %s87
    %s91 = sphi 0, %s90
    %s107 = sphi 0, %s91
  $region4: #{stare_encoder_forward.5} parent=0 // loop_header_branch
    %12 = sbr.rel (%p10) target = $region8
  $region5: #{stare_encoder_forward.5} parent=0 // loop_body
    %s14 = ssub.s32 %s9, 1
    %s15 = ssub.s32 %s9, 2
    %s16 = sadd.s32 %s9, 1
    %s17 = ssub.s32 %s9, %s16
    %p18 = scmp.eq.s32.totalorder %s17, 0
    %s20 = sadd.s32 %s19, 1
    %s21 = scalar_select %p18, %s19, %s20
    %p24 = pneg %p18
    %p25 = scmp.eq.s32.totalorder %s9, 1
    %p26 = por %p24, %p25
    %p27 = scmp.ne.s32.totalorder %s19, %s22
    %p28 = scmp.eq.s32.totalorder %s9, 0
    %p29 = por %p27, %p28
    %p30 = scmp.ne.s32.totalorder %s19, %s22
    %p31 = scmp.eq.s32.totalorder %s14, 1
    %p32 = por %p30, %p31
    %p33 = scmp.ne.s32.totalorder %s22, %s23
    %p34 = scmp.eq.s32.totalorder %s14, 0
    %p35 = por %p33, %p34
    %p36 = scmp.ne.s32.totalorder %s22, %s23
    %p37 = scmp.eq.s32.totalorder %s15, 1
    %p38 = por %p36, %p37
    %p40 = scmp.ne.s32.totalorder %s23, %s39
    %p41 = scmp.eq.s32.totalorder %s15, 0
    %p42 = por %p40, %p41
    %s44 = sadd.s32 %s43, 1
    %p47 = scmp.eq.s32.totalorder %s9, 1
    %p48 = scmp.ne.s32.totalorder %s43, %s45
    %p49 = scmp.eq.s32.totalorder %s9, 0
    %p50 = por %p48, %p49
    %p51 = scmp.ne.s32.totalorder %s43, %s45
    %p52 = scmp.eq.s32.totalorder %s14, 1
    %p53 = por %p51, %p52
    %p54 = scmp.ne.s32.totalorder %s45, %s46
    %p55 = scmp.eq.s32.totalorder %s14, 0
    %p56 = por %p54, %p55
    %p57 = scmp.ne.s32.totalorder %s45, %s46
    %p58 = scmp.eq.s32.totalorder %s15, 1
    %p59 = por %p57, %p58
    %p61 = scmp.ne.s32.totalorder %s46, %s60
    %p62 = scmp.eq.s32.totalorder %s15, 0
    %p63 = por %p61, %p62
    %s65 = sadd.s32 %s64, 1
    %p68 = scmp.eq.s32.totalorder %s9, 1
    %p69 = scmp.ne.s32.totalorder %s64, %s66
    %p70 = scmp.eq.s32.totalorder %s9, 0
    %p71 = por %p69, %p70
    %p72 = scmp.ne.s32.totalorder %s64, %s66
    %p73 = scmp.eq.s32.totalorder %s14, 1
    %p74 = por %p72, %p73
    %p75 = scmp.ne.s32.totalorder %s66, %s67
    %p76 = scmp.eq.s32.totalorder %s14, 0
    %p77 = por %p75, %p76
    %p78 = scmp.ne.s32.totalorder %s66, %s67
    %p79 = scmp.eq.s32.totalorder %s15, 1
    %p80 = por %p78, %p79
    %p82 = scmp.ne.s32.totalorder %s67, %s81
    %p83 = scmp.eq.s32.totalorder %s15, 0
    %p84 = por %p82, %p83
    %s85 = ssub.s32 %s9, %s16
    %p86 = scmp.eq.s32.totalorder %s85, 0
    %s88 = sadd.s32 %s87, 1
    %s89 = scalar_select %p86, %s87, %s88
    %p92 = pneg %p86
    %p93 = scmp.eq.s32.totalorder %s9, 1
    %p94 = por %p92, %p93
    %p95 = scmp.ne.s32.totalorder %s87, %s90
    %p96 = scmp.eq.s32.totalorder %s9, 0
    %p97 = por %p95, %p96
    %p98 = scmp.ne.s32.totalorder %s87, %s90
    %p99 = scmp.eq.s32.totalorder %s14, 1
    %p100 = por %p98, %p99
    %p101 = scmp.ne.s32.totalorder %s90, %s91
    %p102 = scmp.eq.s32.totalorder %s14, 0
    %p103 = por %p101, %p102
    %p104 = scmp.ne.s32.totalorder %s90, %s91
    %p105 = scmp.eq.s32.totalorder %s15, 1
    %p106 = por %p104, %p105
    %p108 = scmp.ne.s32.totalorder %s91, %s107
    %p109 = scmp.eq.s32.totalorder %s15, 0
    %p110 = por %p108, %p109
    %p111 = scmp.le.s32.totalorder 1, %s9
    %p112 = scmp.lt.s32.totalorder %s9, 3
    %p113 = pnand %p111, %p112
    %p114 = pneg %p113
    // Predicated region
    $region9: #{stare_encoder_forward.5} parent=5 // pred_check
      _
    $region10: #{stare_encoder_forward.5} parent=5 // pred_check_branch
      %116 = sbr.rel (%p113) target = $region12
    $region11: #{stare_encoder_forward.5} parent=5 // pred_region
      %s117 = ssub.s32 %s9, 1
      // Predicated region
      $region13: #{stare_encoder_forward.5} parent=11 // pred_check
        %p118 = pneg %p56
      $region14: #{stare_encoder_forward.5} parent=11 // pred_check_branch
        %120 = sbr.rel (%p118) target = $region16
      $region15: #{stare_encoder_forward.5} parent=11 // pred_region
        _
      $region16: #{stare_encoder_forward.5} parent=11 // pred_fallthru
        _
      // Predicated region
      $region17: #{stare_encoder_forward.5} parent=11 // pred_check
        %p121 = pneg %p77
      $region18: #{stare_encoder_forward.5} parent=11 // pred_check_branch
        %123 = sbr.rel (%p121) target = $region20
      $region19: #{stare_encoder_forward.5} parent=11 // pred_region
        _
      $region20: #{stare_encoder_forward.5} parent=11 // pred_fallthru
        _
    $region12: #{stare_encoder_forward.5} parent=5 // pred_fallthru
      _
    %p124 = scmp.lt.s32.totalorder %s9, 2
    // Predicated region
    $region21: #{stare_encoder_forward.5} parent=5 // pred_check
      %p125 = pneg %p124
    $region22: #{stare_encoder_forward.5} parent=5 // pred_check_branch
      %127 = sbr.rel (%p125) target = $region24
    $region23: #{stare_encoder_forward.5} parent=5 // pred_region
      // Predicated region
      $region25: #{stare_encoder_forward.5} parent=23 // pred_check
        %p128 = pneg %p29
      $region26: #{stare_encoder_forward.5} parent=23 // pred_check_branch
        %130 = sbr.rel (%p128) target = $region28
      $region27: #{stare_encoder_forward.5} parent=23 // pred_region
        %s131 = smul.u32 4, %s9
        %p132 = scmp.lt.s32.totalorder %s131, 7
        %s133 = scalar_select %p132, %s131, 7
        %s134 = smul.addr %s133, 8
        %s135 = scalar_lea.vmem %s0, %s134
        %s136 = smul.u32 4, %s9
      $region28: #{stare_encoder_forward.5} parent=23 // pred_fallthru
        _
    $region24: #{stare_encoder_forward.5} parent=5 // pred_fallthru
      _
    %p137 = scmp.le.s32.totalorder 1, %s9
    %p138 = scmp.lt.s32.totalorder %s9, 3
    %p139 = pnand %p137, %p138
    %p140 = pneg %p139
    // Predicated region
    $region29: #{stare_encoder_forward.5} parent=5 // pred_check
      _
    $region30: #{stare_encoder_forward.5} parent=5 // pred_check_branch
      %142 = sbr.rel (%p139) target = $region32
    $region31: #{stare_encoder_forward.5} parent=5 // pred_region
      %s143 = ssub.s32 %s9, 1
      %s144 = smul.u32 4, %s14
      %p145 = scmp.lt.s32.totalorder %s144, 7
      %s146 = scalar_select %p145, %s144, 7
      %s147 = smul.addr %s146, 8
      %s148 = scalar_lea.vmem %s0, %s147
      %p149 = pneg %p35
      %p150 = pneg %p32
      %p151 = pneg %p56
      %p152 = pneg %p53
      %p153 = pneg %p77
      %p154 = pneg %p74
      %p155 = pneg %p103
      %p156 = pneg %p100
      %s157 = smul.u32 4, %s14
      %p158 = scmp.lt.s32.totalorder %s157, 7
      %s159 = scalar_select %p158, %s157, 7
      %s160 = smul.addr %s159, 8
      %s161 = scalar_lea.vmem %s3, %s160
      %s162 = smul.u32 4, %s14
      %p163 = scmp.lt.s32.totalorder %s162, 7
      %s164 = scalar_select %p163, %s162, 7
      %s165 = smul.addr %s164, 8
      %s166 = scalar_lea.vmem %s0, %s165
      %s167 = smul.u32 4, %s14
      %s168 = smul.u32 4, %s14
      %p169 = scmp.lt.s32.totalorder %s168, 7
      %s170 = scalar_select %p169, %s168, 7
      %s171 = smul.addr %s170, 8
      %s172 = scalar_lea.vmem %s3, %s171
      %s173 = smul.u32 4, %s14
      %v174 = vld [vmem:[%s166] sm:$0xff]
      %v175 = vld [vmem:[%s166 + $0x8] sm:$0xff]
      %v176 = vld [vmem:[%s166 + $0x10] sm:$0xff]
      %v177 = vld [vmem:[%s166 + $0x18] sm:$0xff]
      %v178 = vld [vmem:[%s1] sm:$0xff]
      %v179 = vld [vmem:[%s1 + $0x8] sm:$0xff]
      %v180 = vld [vmem:[%s1 + $0x10] sm:$0xff]
      %v181 = vld [vmem:[%s1 + $0x18] sm:$0xff]
      %v182 = vld [vmem:[%s1 + $0x20] sm:$0xff]
      %v183 = vld [vmem:[%s1 + $0x28] sm:$0xff]
      %v184 = vld [vmem:[%s1 + $0x30] sm:$0xff]
      %v185 = vld [vmem:[%s1 + $0x38] sm:$0xff]
      %v186 = vld [vmem:[%s1 + $0x40] sm:$0xff]
      %v187 = vld [vmem:[%s1 + $0x48] sm:$0xff]
      %v188 = vld [vmem:[%s1 + $0x50] sm:$0xff]
      %v189 = vld [vmem:[%s1 + $0x58] sm:$0xff]
      %v190 = vld [vmem:[%s1 + $0x60] sm:$0xff]
      %v191 = vld [vmem:[%s1 + $0x68] sm:$0xff]
      %v192 = vld [vmem:[%s1 + $0x70] sm:$0xff]
      %v193 = vld [vmem:[%s1 + $0x78] sm:$0xff]
      %v194 = vld [vmem:[%s2] sm:$0x1]
      %v196 = vlaneseq
      %v197 = vshrl.u32 %v196, 7
      %v198 = vsub.s32 0, %v197
      %v199 = vrot.slane %v194, %v198
      %201 = vmatprep.subr.mxu0 0.0
      %202 = vmatpush1.msra.mxu0 %v178
      %203 = vmatprep.subr.mxu0 0.0
      %204 = vmatpush1.msra.mxu0 %v179
      %205 = vmatprep.subr.mxu0 0.0
      %206 = vmatpush1.msra.mxu0 %v180
      %207 = vmatprep.subr.mxu0 0.0
      %208 = vmatpush1.msra.mxu0 %v181
      %209 = vmatprep.subr.mxu0 0.0
      %210 = vmatpush1.msra.mxu0 %v182
      %211 = vmatprep.subr.mxu0 0.0
      %212 = vmatpush1.msra.mxu0 %v183
      %213 = vmatprep.subr.mxu0 0.0
      %214 = vmatpush1.msra.mxu0 %v184
      %215 = vmatprep.subr.mxu0 0.0
      %216 = vmatpush1.msra.mxu0 %v185
      %217 = vmatprep.subr.mxu0 0.0
      %218 = vmatpush1.msra.mxu0 %v186
      %219 = vmatprep.subr.mxu0 0.0
      %220 = vmatpush1.msra.mxu0 %v187
      %221 = vmatprep.subr.mxu0 0.0
      %222 = vmatpush1.msra.mxu0 %v188
      %223 = vmatprep.subr.mxu0 0.0
      %224 = vmatpush1.msra.mxu0 %v189
      %225 = vmatprep.subr.mxu0 0.0
      %226 = vmatpush1.msra.mxu0 %v190
      %227 = vmatprep.subr.mxu0 0.0
      %228 = vmatpush1.msra.mxu0 %v191
      %229 = vmatprep.subr.mxu0 0.0
      %230 = vmatpush1.msra.mxu0 %v192
      %231 = vmatprep.subr.mxu0 0.0
      %232 = vmatpush1.msra.mxu0 %v193
      %233 = vmatprep.subr.mxu0 0.0
      %234 = vmatpush1.msra.mxu0 0.0
      %235 = vmatprep.subr.mxu0 0.0
      %236 = vmatpush1.msra.mxu0 0.0
      %237 = vmatprep.subr.mxu0 0.0
      %238 = vmatpush1.msra.mxu0 0.0
      %239 = vmatprep.subr.mxu0 0.0
      %240 = vmatpush1.msra.mxu0 0.0
      %241 = vmatprep.subr.mxu0 0.0
      %242 = vmatpush1.msra.mxu0 0.0
      %243 = vmatprep.subr.mxu0 0.0
      %244 = vmatpush1.msra.mxu0 0.0
      %245 = vmatprep.subr.mxu0 0.0
      %246 = vmatpush1.msra.mxu0 0.0
      %247 = vmatprep.subr.mxu0 0.0
      %248 = vmatpush1.msra.mxu0 0.0
      %249 = vmatprep.subr.mxu0 0.0
      %250 = vmatpush1.msra.mxu0 0.0
      %251 = vmatprep.subr.mxu0 0.0
      %252 = vmatpush1.msra.mxu0 0.0
      %253 = vmatprep.subr.mxu0 0.0
      %254 = vmatpush1.msra.mxu0 0.0
      %255 = vmatprep.subr.mxu0 0.0
      %256 = vmatpush1.msra.mxu0 0.0
      %257 = vmatprep.subr.mxu0 0.0
      %258 = vmatpush1.msra.mxu0 0.0
      %259 = vmatprep.subr.mxu0 0.0
      %260 = vmatpush1.msra.mxu0 0.0
      %261 = vmatprep.subr.mxu0 0.0
      %262 = vmatpush1.msra.mxu0 0.0
      %263 = vmatprep.subr.mxu0 0.0
      %264 = vmatpush1.msra.mxu0 0.0
      %265 = vmatprep.mubr.f32.mxu0 0.0
      %266 = vmatmul.mubr.f32.gmra.mrb[0].mxu0 %v174
      %v267 = vpop.f32.mrb[0].mxu0
      %v268 = vadd.f32 %v199, %v267
      %v269 = vpop.f32.mrb[0].mxu0
      %270 = vmatprep.mubr.f32.mxu0 0.0
      %271 = vmatmul.mubr.f32.gmra.mrb[0].mxu0 %v175
      %v272 = vpop.f32.mrb[0].mxu0
      %v273 = vadd.f32 %v199, %v272
      %v274 = vpop.f32.mrb[0].mxu0
      %275 = vmatprep.mubr.f32.mxu0 0.0
      %276 = vmatmul.mubr.f32.gmra.mrb[0].mxu0 %v176
      %v277 = vpop.f32.mrb[0].mxu0
      %v278 = vadd.f32 %v199, %v277
      %v279 = vpop.f32.mrb[0].mxu0
      %280 = vmatprep.mubr.f32.mxu0 0.0
      %281 = vmatmul.mubr.f32.gmra.mrb[0].mxu0 %v177
      %v282 = vpop.f32.mrb[0].mxu0
      %v283 = vadd.f32 %v199, %v282
      %v284 = vpop.f32.mrb[0].mxu0
      %285 = vdwg.mxu0
      %286 = vst [vmem:[%s172] sm:$0xff] %v268
      %287 = vst [vmem:[%s172 + $0x8] sm:$0xff] %v273
      %288 = vst [vmem:[%s172 + $0x10] sm:$0xff] %v278
      %289 = vst [vmem:[%s172 + $0x18] sm:$0xff] %v283
      %s290 = smul.u32 4, %s14
      %p291 = scmp.lt.s32.totalorder %s290, 7
      %s292 = scalar_select %p291, %s290, 7
      %s293 = smul.addr %s292, 8
      %s294 = scalar_lea.vmem %s3, %s293
      // Predicated region
      $region33: #{stare_encoder_forward.5} parent=31 // pred_check
        %p295 = pneg %p100
      $region34: #{stare_encoder_forward.5} parent=31 // pred_check_branch
        %297 = sbr.rel (%p295) target = $region36
      $region35: #{stare_encoder_forward.5} parent=31 // pred_region
        %s298 = smul.u32 4, %s14
      $region36: #{stare_encoder_forward.5} parent=31 // pred_fallthru
        _
    $region32: #{stare_encoder_forward.5} parent=5 // pred_fallthru
      _
    %p299 = scmp.le.s32.totalorder 2, %s9
    // Predicated region
    $region37: #{stare_encoder_forward.5} parent=5 // pred_check
      %p300 = pneg %p299
    $region38: #{stare_encoder_forward.5} parent=5 // pred_check_branch
      %302 = sbr.rel (%p300) target = $region40
    $region39: #{stare_encoder_forward.5} parent=5 // pred_region
      %s303 = ssub.s32 %s9, 2
      // Predicated region
      $region41: #{stare_encoder_forward.5} parent=39 // pred_check
        %p304 = pneg %p106
      $region42: #{stare_encoder_forward.5} parent=39 // pred_check_branch
        %306 = sbr.rel (%p304) target = $region44
      $region43: #{stare_encoder_forward.5} parent=39 // pred_region
        %s307 = smul.u32 4, %s15
        %p308 = scmp.lt.s32.totalorder %s307, 7
        %s309 = scalar_select %p308, %s307, 7
        %s310 = smul.addr %s309, 8
        %s311 = scalar_lea.vmem %s3, %s310
      $region44: #{stare_encoder_forward.5} parent=39 // pred_fallthru
        _
    $region40: #{stare_encoder_forward.5} parent=5 // pred_fallthru
      _
  $region6: #{stare_encoder_forward.5} parent=0 // loop_footer
    %s13 = sadd.s32 1, %s9
  $region7: #{stare_encoder_forward.5} parent=0 // loop_footer_branch
    %8 = sbr.rel target = $region3
  $region8: #{stare_encoder_forward.5} parent=0 // loop_exit
    _

// kernel: stare_encoder_forward.6
$region0: #{stare_encoder_forward.6}
  #allocation0 [shape = 'u32[]', space=smem, size = 0x4, offset = 0x4, fixed_abs, tag = 'smem constant byte address 0x4 - core index']
  #allocation1 [shape = 'u32[144,128]{1,0:T(1,128)}', space=vmem, size = 0x12000, scoped, tag = 'internal scratch']
  %s0 = inlined_call_operand.vmem [shape: bf16[2,48,128], index: 0, kind: input, shape index: {}]
  %s1 = inlined_call_operand.vmem [shape: bf16[2,48,128], index: 1, kind: input, shape index: {}]
  %s2 = inlined_call_operand.vmem [shape: bf16[2,48,128], index: 2, kind: input, shape index: {}]
  %s3 = inlined_call_operand.vmem [shape: f32[2,48,1], index: 3, kind: input, shape index: {}]
  %s4 = inlined_call_operand.vmem [shape: f32[2,48,1], index: 4, kind: input, shape index: {}]
  %s5 = inlined_call_operand.vmem [shape: bf16[128,128], index: 5, kind: input, shape index: {}]
  %s6 = inlined_call_operand.vmem [shape: f32[1,128], index: 6, kind: input, shape index: {}]
  %s7 = inlined_call_operand.vmem [shape: bf16[2,128,128], index: 7, kind: input, shape index: {}]
  %s8 = inlined_call_operand.vmem [shape: f32[2,48,128], index: 8, kind: output, shape index: {}]
  %s9 = sld [smem:[#allocation0]]
  $region65: #{stare_encoder_forward.6} parent=0
    _
  %s11 = ssub.s32 1, %s9
  %s12 = scalar_select 0, %s11, %s9
  loop: start=0, step=1, limit=6
  $region2: #{stare_encoder_forward.6} parent=0 // loop_pre_header
    _
  $region3: #{stare_encoder_forward.6} parent=0 // loop_header
    %s14 = sphi 0, %s18
    %p15 = scmp.ge.s32.totalorder %s14, 6
    %s21 = sphi 0, %s33
    %s22 = sphi 0, %s29
    %s23 = sphi 0, %s21
    %s24 = sphi 0, %s22
    %s25 = sphi 0, %s23
    %s26 = sphi 0, %s24
    %s38 = sphi 0, %s40
    %s41 = sphi 0, %s38
    %s42 = sphi 0, %s41
    %s58 = sphi 0, %s42
    %s66 = sphi 0, %s68
    %s69 = sphi 0, %s66
    %s70 = sphi 0, %s69
    %s86 = sphi 0, %s70
    %s94 = sphi 0, %s96
    %s97 = sphi 0, %s94
    %s98 = sphi 0, %s97
    %s114 = sphi 0, %s98
    %s122 = sphi 0, %s124
    %s125 = sphi 0, %s122
    %s126 = sphi 0, %s125
    %s142 = sphi 0, %s126
    %s150 = sphi 0, %s152
    %s153 = sphi 0, %s150
    %s154 = sphi 0, %s153
    %s170 = sphi 0, %s154
    %s174 = sphi 0, %s174
    %s176 = sphi 0, %s174
    %s177 = sphi 0, %s176
    %s191 = sphi 0, %s177
    %s195 = sphi 0, %s195
    %s197 = sphi 0, %s195
    %s198 = sphi 0, %s197
    %s212 = sphi 0, %s198
    %s218 = sphi 0, %s220
    %s221 = sphi 0, %s218
    %s222 = sphi 0, %s221
    %s238 = sphi 0, %s222
    %s246 = sphi 0, %s248
    %s249 = sphi 0, %s246
    %s250 = sphi 0, %s249
    %s266 = sphi 0, %s250
  $region4: #{stare_encoder_forward.6} parent=0 // loop_header_branch
    %17 = sbr.rel (%p15) target = $region8
  $region5: #{stare_encoder_forward.6} parent=0 // loop_body
    %s19 = ssub.s32 %s14, 1
    %s20 = ssub.s32 %s14, 2
    %s27 = sadd.s32 1, %s22
    %p28 = scmp.ge.s32.totalorder %s27, 2
    %s29 = scalar_select %p28, 0, %s27
    %s30 = sadd.s32 1, %s21
    %s31 = scalar_select %p28, %s30, %s21
    %p32 = scmp.ge.s32.totalorder %s31, 2
    %s33 = scalar_select %p32, 0, %s31
    %s34 = ssub.s32 %s21, %s33
    %s35 = ssub.s32 %s22, %s29
    %s36 = sor.u32 %s34, %s35
    %p37 = scmp.eq.s32.totalorder %s36, 0
    %s39 = sadd.s32 %s38, 1
    %s40 = scalar_select %p37, %s38, %s39
    %p43 = pneg %p37
    %p44 = scmp.eq.s32.totalorder %s14, 3
    %p45 = por %p43, %p44
    %p46 = scmp.ne.s32.totalorder %s38, %s41
    %p47 = scmp.eq.s32.totalorder %s14, 0
    %p48 = por %p46, %p47
    %p49 = scmp.ne.s32.totalorder %s38, %s41
    %p50 = scmp.eq.s32.totalorder %s19, 3
    %p51 = por %p49, %p50
    %p52 = scmp.ne.s32.totalorder %s41, %s42
    %p53 = scmp.eq.s32.totalorder %s19, 0
    %p54 = por %p52, %p53
    %p55 = scmp.ne.s32.totalorder %s41, %s42
    %p56 = scmp.eq.s32.totalorder %s20, 3
    %p57 = por %p55, %p56
    %p59 = scmp.ne.s32.totalorder %s42, %s58
    %p60 = scmp.eq.s32.totalorder %s20, 0
    %p61 = por %p59, %p60
    %s62 = ssub.s32 %s21, %s33
    %s63 = ssub.s32 %s22, %s29
    %s64 = sor.u32 %s62, %s63
    %p65 = scmp.eq.s32.totalorder %s64, 0
    %s67 = sadd.s32 %s66, 1
    %s68 = scalar_select %p65, %s66, %s67
    %p71 = pneg %p65
    %p72 = scmp.eq.s32.totalorder %s14, 3
    %p73 = por %p71, %p72
    %p74 = scmp.ne.s32.totalorder %s66, %s69
    %p75 = scmp.eq.s32.totalorder %s14, 0
    %p76 = por %p74, %p75
    %p77 = scmp.ne.s32.totalorder %s66, %s69
    %p78 = scmp.eq.s32.totalorder %s19, 3
    %p79 = por %p77, %p78
    %p80 = scmp.ne.s32.totalorder %s69, %s70
    %p81 = scmp.eq.s32.totalorder %s19, 0
    %p82 = por %p80, %p81
    %p83 = scmp.ne.s32.totalorder %s69, %s70
    %p84 = scmp.eq.s32.totalorder %s20, 3
    %p85 = por %p83, %p84
    %p87 = scmp.ne.s32.totalorder %s70, %s86
    %p88 = scmp.eq.s32.totalorder %s20, 0
    %p89 = por %p87, %p88
    %s90 = ssub.s32 %s21, %s33
    %s91 = ssub.s32 %s22, %s29
    %s92 = sor.u32 %s90, %s91
    %p93 = scmp.eq.s32.totalorder %s92, 0
    %s95 = sadd.s32 %s94, 1
    %s96 = scalar_select %p93, %s94, %s95
    %p99 = pneg %p93
    %p100 = scmp.eq.s32.totalorder %s14, 3
    %p101 = por %p99, %p100
    %p102 = scmp.ne.s32.totalorder %s94, %s97
    %p103 = scmp.eq.s32.totalorder %s14, 0
    %p104 = por %p102, %p103
    %p105 = scmp.ne.s32.totalorder %s94, %s97
    %p106 = scmp.eq.s32.totalorder %s19, 3
    %p107 = por %p105, %p106
    %p108 = scmp.ne.s32.totalorder %s97, %s98
    %p109 = scmp.eq.s32.totalorder %s19, 0
    %p110 = por %p108, %p109
    %p111 = scmp.ne.s32.totalorder %s97, %s98
    %p112 = scmp.eq.s32.totalorder %s20, 3
    %p113 = por %p111, %p112
    %p115 = scmp.ne.s32.totalorder %s98, %s114
    %p116 = scmp.eq.s32.totalorder %s20, 0
    %p117 = por %p115, %p116
    %s118 = ssub.s32 %s21, %s33
    %s119 = ssub.s32 %s22, %s29
    %s120 = sor.u32 %s118, %s119
    %p121 = scmp.eq.s32.totalorder %s120, 0
    %s123 = sadd.s32 %s122, 1
    %s124 = scalar_select %p121, %s122, %s123
    %p127 = pneg %p121
    %p128 = scmp.eq.s32.totalorder %s14, 3
    %p129 = por %p127, %p128
    %p130 = scmp.ne.s32.totalorder %s122, %s125
    %p131 = scmp.eq.s32.totalorder %s14, 0
    %p132 = por %p130, %p131
    %p133 = scmp.ne.s32.totalorder %s122, %s125
    %p134 = scmp.eq.s32.totalorder %s19, 3
    %p135 = por %p133, %p134
    %p136 = scmp.ne.s32.totalorder %s125, %s126
    %p137 = scmp.eq.s32.totalorder %s19, 0
    %p138 = por %p136, %p137
    %p139 = scmp.ne.s32.totalorder %s125, %s126
    %p140 = scmp.eq.s32.totalorder %s20, 3
    %p141 = por %p139, %p140
    %p143 = scmp.ne.s32.totalorder %s126, %s142
    %p144 = scmp.eq.s32.totalorder %s20, 0
    %p145 = por %p143, %p144
    %s146 = ssub.s32 %s21, %s33
    %s147 = ssub.s32 %s22, %s29
    %s148 = sor.u32 %s146, %s147
    %p149 = scmp.eq.s32.totalorder %s148, 0
    %s151 = sadd.s32 %s150, 1
    %s152 = scalar_select %p149, %s150, %s151
    %p155 = pneg %p149
    %p156 = scmp.eq.s32.totalorder %s14, 3
    %p157 = por %p155, %p156
    %p158 = scmp.ne.s32.totalorder %s150, %s153
    %p159 = scmp.eq.s32.totalorder %s14, 0
    %p160 = por %p158, %p159
    %p161 = scmp.ne.s32.totalorder %s150, %s153
    %p162 = scmp.eq.s32.totalorder %s19, 3
    %p163 = por %p161, %p162
    %p164 = scmp.ne.s32.totalorder %s153, %s154
    %p165 = scmp.eq.s32.totalorder %s19, 0
    %p166 = por %p164, %p165
    %p167 = scmp.ne.s32.totalorder %s153, %s154
    %p168 = scmp.eq.s32.totalorder %s20, 3
    %p169 = por %p167, %p168
    %p171 = scmp.ne.s32.totalorder %s154, %s170
    %p172 = scmp.eq.s32.totalorder %s20, 0
    %p173 = por %p171, %p172
    %s175 = sadd.s32 %s174, 1
    %p178 = scmp.eq.s32.totalorder %s14, 3
    %p179 = scmp.ne.s32.totalorder %s174, %s176
    %p180 = scmp.eq.s32.totalorder %s14, 0
    %p181 = por %p179, %p180
    %p182 = scmp.ne.s32.totalorder %s174, %s176
    %p183 = scmp.eq.s32.totalorder %s19, 3
    %p184 = por %p182, %p183
    %p185 = scmp.ne.s32.totalorder %s176, %s177
    %p186 = scmp.eq.s32.totalorder %s19, 0
    %p187 = por %p185, %p186
    %p188 = scmp.ne.s32.totalorder %s176, %s177
    %p189 = scmp.eq.s32.totalorder %s20, 3
    %p190 = por %p188, %p189
    %p192 = scmp.ne.s32.totalorder %s177, %s191
    %p193 = scmp.eq.s32.totalorder %s20, 0
    %p194 = por %p192, %p193
    %s196 = sadd.s32 %s195, 1
    %p199 = scmp.eq.s32.totalorder %s14, 3
    %p200 = scmp.ne.s32.totalorder %s195, %s197
    %p201 = scmp.eq.s32.totalorder %s14, 0
    %p202 = por %p200, %p201
    %p203 = scmp.ne.s32.totalorder %s195, %s197
    %p204 = scmp.eq.s32.totalorder %s19, 3
    %p205 = por %p203, %p204
    %p206 = scmp.ne.s32.totalorder %s197, %s198
    %p207 = scmp.eq.s32.totalorder %s19, 0
    %p208 = por %p206, %p207
    %p209 = scmp.ne.s32.totalorder %s197, %s198
    %p210 = scmp.eq.s32.totalorder %s20, 3
    %p211 = por %p209, %p210
    %p213 = scmp.ne.s32.totalorder %s198, %s212
    %p214 = scmp.eq.s32.totalorder %s20, 0
    %p215 = por %p213, %p214
    %s216 = ssub.s32 %s21, %s33
    %p217 = scmp.eq.s32.totalorder %s216, 0
    %s219 = sadd.s32 %s218, 1
    %s220 = scalar_select %p217, %s218, %s219
    %p223 = pneg %p217
    %p224 = scmp.eq.s32.totalorder %s14, 3
    %p225 = por %p223, %p224
    %p226 = scmp.ne.s32.totalorder %s218, %s221
    %p227 = scmp.eq.s32.totalorder %s14, 0
    %p228 = por %p226, %p227
    %p229 = scmp.ne.s32.totalorder %s218, %s221
    %p230 = scmp.eq.s32.totalorder %s19, 3
    %p231 = por %p229, %p230
    %p232 = scmp.ne.s32.totalorder %s221, %s222
    %p233 = scmp.eq.s32.totalorder %s19, 0
    %p234 = por %p232, %p233
    %p235 = scmp.ne.s32.totalorder %s221, %s222
    %p236 = scmp.eq.s32.totalorder %s20, 3
    %p237 = por %p235, %p236
    %p239 = scmp.ne.s32.totalorder %s222, %s238
    %p240 = scmp.eq.s32.totalorder %s20, 0
    %p241 = por %p239, %p240
    %s242 = ssub.s32 %s21, %s33
    %s243 = ssub.s32 %s22, %s29
    %s244 = sor.u32 %s242, %s243
    %p245 = scmp.eq.s32.totalorder %s244, 0
    %s247 = sadd.s32 %s246, 1
    %s248 = scalar_select %p245, %s246, %s247
    %p251 = pneg %p245
    %p252 = scmp.eq.s32.totalorder %s14, 3
    %p253 = por %p251, %p252
    %p254 = scmp.ne.s32.totalorder %s246, %s249
    %p255 = scmp.eq.s32.totalorder %s14, 0
    %p256 = por %p254, %p255
    %p257 = scmp.ne.s32.totalorder %s246, %s249
    %p258 = scmp.eq.s32.totalorder %s19, 3
    %p259 = por %p257, %p258
    %p260 = scmp.ne.s32.totalorder %s249, %s250
    %p261 = scmp.eq.s32.totalorder %s19, 0
    %p262 = por %p260, %p261
    %p263 = scmp.ne.s32.totalorder %s249, %s250
    %p264 = scmp.eq.s32.totalorder %s20, 3
    %p265 = por %p263, %p264
    %p267 = scmp.ne.s32.totalorder %s250, %s266
    %p268 = scmp.eq.s32.totalorder %s20, 0
    %p269 = por %p267, %p268
    %p270 = scmp.le.s32.totalorder 1, %s14
    %p271 = scmp.lt.s32.totalorder %s14, 5
    %p272 = pnand %p270, %p271
    %p273 = pneg %p272
    // Predicated region
    $region9: #{stare_encoder_forward.6} parent=5 // pred_check
      _
    $region10: #{stare_encoder_forward.6} parent=5 // pred_check_branch
      %275 = sbr.rel (%p272) target = $region12
    $region11: #{stare_encoder_forward.6} parent=5 // pred_region
      %s276 = ssub.s32 %s14, 1
      // Predicated region
      $region13: #{stare_encoder_forward.6} parent=11 // pred_check
        %p277 = pneg %p187
      $region14: #{stare_encoder_forward.6} parent=11 // pred_check_branch
        %279 = sbr.rel (%p277) target = $region16
      $region15: #{stare_encoder_forward.6} parent=11 // pred_region
        _
      $region16: #{stare_encoder_forward.6} parent=11 // pred_fallthru
        _
      // Predicated region
      $region17: #{stare_encoder_forward.6} parent=11 // pred_check
        %p280 = pneg %p208
      $region18: #{stare_encoder_forward.6} parent=11 // pred_check_branch
        %282 = sbr.rel (%p280) target = $region20
      $region19: #{stare_encoder_forward.6} parent=11 // pred_region
        _
      $region20: #{stare_encoder_forward.6} parent=11 // pred_fallthru
        _
    $region12: #{stare_encoder_forward.6} parent=5 // pred_fallthru
      _
    %p283 = scmp.lt.s32.totalorder %s14, 4
    // Predicated region
    $region21: #{stare_encoder_forward.6} parent=5 // pred_check
      %p284 = pneg %p283
    $region22: #{stare_encoder_forward.6} parent=5 // pred_check_branch
      %286 = sbr.rel (%p284) target = $region24
    $region23: #{stare_encoder_forward.6} parent=5 // pred_region
      // Predicated region
      $region25: #{stare_encoder_forward.6} parent=23 // pred_check
        %p287 = pneg %p48
      $region26: #{stare_encoder_forward.6} parent=23 // pred_check_branch
        %289 = sbr.rel (%p287) target = $region28
      $region27: #{stare_encoder_forward.6} parent=23 // pred_region
        %s290 = smul.u32 3, %s22
        %p291 = scmp.lt.s32.totalorder %s21, 1
        %s292 = scalar_select %p291, %s21, 1
        %p293 = scmp.lt.s32.totalorder %s290, 5
        %s294 = scalar_select %p293, %s290, 5
        %s295 = smul.addr %s292, 6
        %s296 = sadd.s32 %s294, %s295
        %s297 = smul.addr %s296, 4
        %s298 = scalar_lea.vmem %s0, %s297
        %s299 = smul.u32 3, %s22
      $region28: #{stare_encoder_forward.6} parent=23 // pred_fallthru
        _
      // Predicated region
      $region29: #{stare_encoder_forward.6} parent=23 // pred_check
        %p300 = pneg %p76
      $region30: #{stare_encoder_forward.6} parent=23 // pred_check_branch
        %302 = sbr.rel (%p300) target = $region32
      $region31: #{stare_encoder_forward.6} parent=23 // pred_region
        %s303 = smul.u32 3, %s22
        %p304 = scmp.lt.s32.totalorder %s21, 1
        %s305 = scalar_select %p304, %s21, 1
        %p306 = scmp.lt.s32.totalorder %s303, 5
        %s307 = scalar_select %p306, %s303, 5
        %s308 = smul.addr %s305, 6
        %s309 = sadd.s32 %s307, %s308
        %s310 = smul.addr %s309, 4
        %s311 = scalar_lea.vmem %s1, %s310
        %s312 = smul.u32 3, %s22
      $region32: #{stare_encoder_forward.6} parent=23 // pred_fallthru
        _
      // Predicated region
      $region33: #{stare_encoder_forward.6} parent=23 // pred_check
        %p313 = pneg %p104
      $region34: #{stare_encoder_forward.6} parent=23 // pred_check_branch
        %315 = sbr.rel (%p313) target = $region36
      $region35: #{stare_encoder_forward.6} parent=23 // pred_region
        %s316 = smul.u32 3, %s22
        %p317 = scmp.lt.s32.totalorder %s21, 1
        %s318 = scalar_select %p317, %s21, 1
        %p319 = scmp.lt.s32.totalorder %s316, 5
        %s320 = scalar_select %p319, %s316, 5
        %s321 = smul.addr %s318, 6
        %s322 = sadd.s32 %s320, %s321
        %s323 = smul.addr %s322, 4
        %s324 = scalar_lea.vmem %s2, %s323
        %s325 = smul.u32 3, %s22
      $region36: #{stare_encoder_forward.6} parent=23 // pred_fallthru
        _
      // Predicated region
      $region37: #{stare_encoder_forward.6} parent=23 // pred_check
        %p326 = pneg %p132
      $region38: #{stare_encoder_forward.6} parent=23 // pred_check_branch
        %328 = sbr.rel (%p326) target = $region40
      $region39: #{stare_encoder_forward.6} parent=23 // pred_region
        %s329 = smul.u32 3, %s22
        %p330 = scmp.lt.s32.totalorder %s21, 1
        %s331 = scalar_select %p330, %s21, 1
        %p332 = scmp.lt.s32.totalorder %s329, 5
        %s333 = scalar_select %p332, %s329, 5
        %s334 = smul.addr %s331, 6
        %s335 = sadd.s32 %s333, %s334
        %s336 = smul.addr %s335, 8
        %s337 = scalar_lea.vmem %s3, %s336
        %s338 = smul.u32 3, %s22
      $region40: #{stare_encoder_forward.6} parent=23 // pred_fallthru
        _
      // Predicated region
      $region41: #{stare_encoder_forward.6} parent=23 // pred_check
        %p339 = pneg %p160
      $region42: #{stare_encoder_forward.6} parent=23 // pred_check_branch
        %341 = sbr.rel (%p339) target = $region44
      $region43: #{stare_encoder_forward.6} parent=23 // pred_region
        %s342 = smul.u32 3, %s22
        %p343 = scmp.lt.s32.totalorder %s21, 1
        %s344 = scalar_select %p343, %s21, 1
        %p345 = scmp.lt.s32.totalorder %s342, 5
        %s346 = scalar_select %p345, %s342, 5
        %s347 = smul.addr %s344, 6
        %s348 = sadd.s32 %s346, %s347
        %s349 = smul.addr %s348, 8
        %s350 = scalar_lea.vmem %s4, %s349
        %s351 = smul.u32 3, %s22
      $region44: #{stare_encoder_forward.6} parent=23 // pred_fallthru
        _
      // Predicated region
      $region45: #{stare_encoder_forward.6} parent=23 // pred_check
        %p352 = pneg %p228
      $region46: #{stare_encoder_forward.6} parent=23 // pred_check_branch
        %354 = sbr.rel (%p352) target = $region48
      $region47: #{stare_encoder_forward.6} parent=23 // pred_region
        %p355 = scmp.lt.s32.totalorder %s21, 1
        %s356 = scalar_select %p355, %s21, 1
        %s357 = smul.addr %s356, 16
        %s358 = smul.addr %s357, 4
        %s359 = scalar_lea.vmem %s7, %s358
      $region48: #{stare_encoder_forward.6} parent=23 // pred_fallthru
        _
    $region24: #{stare_encoder_forward.6} parent=5 // pred_fallthru
      _
    %p360 = scmp.le.s32.totalorder 1, %s14
    %p361 = scmp.lt.s32.totalorder %s14, 5
    %p362 = pnand %p360, %p361
    %p363 = pneg %p362
    // Predicated region
    $region49: #{stare_encoder_forward.6} parent=5 // pred_check
      _
    $region50: #{stare_encoder_forward.6} parent=5 // pred_check_branch
      %365 = sbr.rel (%p362) target = $region52
    $region51: #{stare_encoder_forward.6} parent=5 // pred_region
      %s366 = ssub.s32 %s14, 1
      %s367 = smul.u32 3, %s24
      %p368 = scmp.lt.s32.totalorder %s23, 1
      %s369 = scalar_select %p368, %s23, 1
      %p370 = scmp.lt.s32.totalorder %s367, 5
      %s371 = scalar_select %p370, %s367, 5
      %s372 = smul.addr %s369, 6
      %s373 = sadd.s32 %s371, %s372
      %s374 = smul.addr %s373, 4
      %s375 = scalar_lea.vmem %s0, %s374
      %p376 = pneg %p54
      %p377 = pneg %p51
      %s378 = smul.u32 3, %s24
      %p379 = scmp.lt.s32.totalorder %s23, 1
      %s380 = scalar_select %p379, %s23, 1
      %p381 = scmp.lt.s32.totalorder %s378, 5
      %s382 = scalar_select %p381, %s378, 5
      %s383 = smul.addr %s380, 6
      %s384 = sadd.s32 %s382, %s383
      %s385 = smul.addr %s384, 4
      %s386 = scalar_lea.vmem %s1, %s385
      %p387 = pneg %p82
      %p388 = pneg %p79
      %s389 = smul.u32 3, %s24
      %p390 = scmp.lt.s32.totalorder %s23, 1
      %s391 = scalar_select %p390, %s23, 1
      %p392 = scmp.lt.s32.totalorder %s389, 5
      %s393 = scalar_select %p392, %s389, 5
      %s394 = smul.addr %s391, 6
      %s395 = sadd.s32 %s393, %s394
      %s396 = smul.addr %s395, 4
      %s397 = scalar_lea.vmem %s2, %s396
      %p398 = pneg %p110
      %p399 = pneg %p107
      %s400 = smul.u32 3, %s24
      %p401 = scmp.lt.s32.totalorder %s23, 1
      %s402 = scalar_select %p401, %s23, 1
      %p403 = scmp.lt.s32.totalorder %s400, 5
      %s404 = scalar_select %p403, %s400, 5
      %s405 = smul.addr %s402, 6
      %s406 = sadd.s32 %s404, %s405
      %s407 = smul.addr %s406, 8
      %s408 = scalar_lea.vmem %s3, %s407
      %p409 = pneg %p138
      %p410 = pneg %p135
      %s411 = smul.u32 3, %s24
      %p412 = scmp.lt.s32.totalorder %s23, 1
      %s413 = scalar_select %p412, %s23, 1
      %p414 = scmp.lt.s32.totalorder %s411, 5
      %s415 = scalar_select %p414, %s411, 5
      %s416 = smul.addr %s413, 6
      %s417 = sadd.s32 %s415, %s416
      %s418 = smul.addr %s417, 8
      %s419 = scalar_lea.vmem %s4, %s418
      %p420 = pneg %p166
      %p421 = pneg %p163
      %p422 = pneg %p187
      %p423 = pneg %p184
      %p424 = pneg %p208
      %p425 = pneg %p205
      %p426 = scmp.lt.s32.totalorder %s23, 1
      %s427 = scalar_select %p426, %s23, 1
      %s428 = smul.addr %s427, 16
      %s429 = smul.addr %s428, 4
      %s430 = scalar_lea.vmem %s7, %s429
      %p431 = pneg %p234
      %p432 = pneg %p231
      %p433 = pneg %p262
      %p434 = pneg %p259
      %s435 = smul.u32 3, %s24
      %p436 = scmp.lt.s32.totalorder %s23, 1
      %s437 = scalar_select %p436, %s23, 1
      %p438 = scmp.lt.s32.totalorder %s435, 5
      %s439 = scalar_select %p438, %s435, 5
      %s440 = smul.addr %s437, 6
      %s441 = sadd.s32 %s439, %s440
      %s442 = smul.addr %s441, 8
      %s443 = scalar_lea.vmem %s8, %s442
      %s444 = smul.u32 3, %s24
      %p445 = scmp.lt.s32.totalorder %s23, 1
      %s446 = scalar_select %p445, %s23, 1
      %p447 = scmp.lt.s32.totalorder %s444, 5
      %s448 = scalar_select %p447, %s444, 5
      %s449 = smul.addr %s446, 6
      %s450 = sadd.s32 %s448, %s449
      %s451 = smul.addr %s450, 4
      %s452 = scalar_lea.vmem %s0, %s451
      %s453 = smul.u32 3, %s24
      %s454 = smul.u32 3, %s24
      %p455 = scmp.lt.s32.totalorder %s23, 1
      %s456 = scalar_select %p455, %s23, 1
      %p457 = scmp.lt.s32.totalorder %s454, 5
      %s458 = scalar_select %p457, %s454, 5
      %s459 = smul.addr %s456, 6
      %s460 = sadd.s32 %s458, %s459
      %s461 = smul.addr %s460, 4
      %s462 = scalar_lea.vmem %s1, %s461
      %s463 = smul.u32 3, %s24
      %s464 = smul.u32 3, %s24
      %p465 = scmp.lt.s32.totalorder %s23, 1
      %s466 = scalar_select %p465, %s23, 1
      %p467 = scmp.lt.s32.totalorder %s464, 5
      %s468 = scalar_select %p467, %s464, 5
      %s469 = smul.addr %s466, 6
      %s470 = sadd.s32 %s468, %s469
      %s471 = smul.addr %s470, 4
      %s472 = scalar_lea.vmem %s2, %s471
      %s473 = smul.u32 3, %s24
      %s474 = smul.u32 3, %s24
      %p475 = scmp.lt.s32.totalorder %s23, 1
      %s476 = scalar_select %p475, %s23, 1
      %p477 = scmp.lt.s32.totalorder %s474, 5
      %s478 = scalar_select %p477, %s474, 5
      %s479 = smul.addr %s476, 6
      %s480 = sadd.s32 %s478, %s479
      %s481 = smul.addr %s480, 8
      %s482 = scalar_lea.vmem %s3, %s481
      %s483 = smul.u32 3, %s24
      %s484 = smul.u32 3, %s24
      %p485 = scmp.lt.s32.totalorder %s23, 1
      %s486 = scalar_select %p485, %s23, 1
      %p487 = scmp.lt.s32.totalorder %s484, 5
      %s488 = scalar_select %p487, %s484, 5
      %s489 = smul.addr %s486, 6
      %s490 = sadd.s32 %s488, %s489
      %s491 = smul.addr %s490, 8
      %s492 = scalar_lea.vmem %s4, %s491
      %s493 = smul.u32 3, %s24
      %p494 = scmp.lt.s32.totalorder %s23, 1
      %s495 = scalar_select %p494, %s23, 1
      %s496 = smul.addr %s495, 16
      %s497 = smul.addr %s496, 4
      %s498 = scalar_lea.vmem %s7, %s497
      %s499 = smul.u32 3, %s24
      %p500 = scmp.lt.s32.totalorder %s23, 1
      %s501 = scalar_select %p500, %s23, 1
      %p502 = scmp.lt.s32.totalorder %s499, 5
      %s503 = scalar_select %p502, %s499, 5
      %s504 = smul.addr %s501, 6
      %s505 = sadd.s32 %s503, %s504
      %s506 = smul.addr %s505, 8
      %s507 = scalar_lea.vmem %s8, %s506
      %s508 = smul.u32 3, %s24
      %v510 = vld [vmem:[%s472] sm:$0xf]
      %v511 = vld [vmem:[%s472 + $0x4] sm:$0xf]
      %v512 = vld [vmem:[%s472 + $0x8] sm:$0xf]
      %v513 = vld [vmem:[%s5] sm:$0xf]
      %v514 = vld [vmem:[%s5 + $0x4] sm:$0xf]
      %v515 = vld [vmem:[%s5 + $0x8] sm:$0xf]
      %v516 = vld [vmem:[%s5 + $0xc] sm:$0xf]
      %v517 = vld [vmem:[%s5 + $0x10] sm:$0xf]
      %v518 = vld [vmem:[%s5 + $0x14] sm:$0xf]
      %v519 = vld [vmem:[%s5 + $0x18] sm:$0xf]
      %v520 = vld [vmem:[%s5 + $0x1c] sm:$0xf]
      %v521 = vld [vmem:[%s5 + $0x20] sm:$0xf]
      %v522 = vld [vmem:[%s5 + $0x24] sm:$0xf]
      %v523 = vld [vmem:[%s5 + $0x28] sm:$0xf]
      %v524 = vld [vmem:[%s5 + $0x2c] sm:$0xf]
      %v525 = vld [vmem:[%s5 + $0x30] sm:$0xf]
      %v526 = vld [vmem:[%s5 + $0x34] sm:$0xf]
      %v527 = vld [vmem:[%s5 + $0x38] sm:$0xf]
      %v528 = vld [vmem:[%s5 + $0x3c] sm:$0xf]
      %v532 = vunpack.c.l.b16 %v510
      %v533 = vunpack.c.l.b16 %v511
      %v534 = vunpack.c.l.b16 %v512
      %v535 = vpack.c.b16 %v533, %v532
      %v536 = vpack.c.b16 %v534, %v534
      %v555 = vunpack.c.l.b16 %v513
      %v556 = vunpack.c.l.b16 %v514
      %v557 = vunpack.c.l.b16 %v515
      %v558 = vunpack.c.l.b16 %v516
      %v559 = vunpack.c.l.b16 %v517
      %v560 = vunpack.c.l.b16 %v518
      %v561 = vunpack.c.l.b16 %v519
      %v562 = vunpack.c.l.b16 %v520
      %v563 = vunpack.c.l.b16 %v521
      %v564 = vunpack.c.l.b16 %v522
      %v565 = vunpack.c.l.b16 %v523
      %v566 = vunpack.c.l.b16 %v524
      %v567 = vunpack.c.l.b16 %v525
      %v568 = vunpack.c.l.b16 %v526
      %v569 = vunpack.c.l.b16 %v527
      %v570 = vunpack.c.l.b16 %v528
      %v571 = vpack.c.b16 %v556, %v555
      %v572 = vpack.c.b16 %v558, %v557
      %v573 = vpack.c.b16 %v560, %v559
      %v574 = vpack.c.b16 %v562, %v561
      %v575 = vpack.c.b16 %v564, %v563
      %v576 = vpack.c.b16 %v566, %v565
      %v577 = vpack.c.b16 %v568, %v567
      %v578 = vpack.c.b16 %v570, %v569
      %587 = vmatprep.subr.bf16.mxu0 0
      %588 = vmatpush1.bf16.msra.mxu0 %v571
      %589 = vmatprep.subr.bf16.mxu0 0
      %590 = vmatpush1.bf16.msra.mxu0 %v572
      %591 = vmatprep.subr.bf16.mxu0 0
      %592 = vmatpush1.bf16.msra.mxu0 %v573
      %593 = vmatprep.subr.bf16.mxu0 0
      %594 = vmatpush1.bf16.msra.mxu0 %v574
      %595 = vmatprep.subr.bf16.mxu0 0
      %596 = vmatpush1.bf16.msra.mxu0 %v575
      %597 = vmatprep.subr.bf16.mxu0 0
      %598 = vmatpush1.bf16.msra.mxu0 %v576
      %599 = vmatprep.subr.bf16.mxu0 0
      %600 = vmatpush1.bf16.msra.mxu0 %v577
      %601 = vmatprep.subr.bf16.mxu0 0
      %602 = vmatpush1.bf16.msra.mxu0 %v578
      %603 = vmatprep.subr.bf16.mxu0 0
      %604 = vmatpush1.bf16.msra.mxu0 0
      %605 = vmatprep.subr.bf16.mxu0 0
      %606 = vmatpush1.bf16.msra.mxu0 0
      %607 = vmatprep.subr.bf16.mxu0 0
      %608 = vmatpush1.bf16.msra.mxu0 0
      %609 = vmatprep.subr.bf16.mxu0 0
      %610 = vmatpush1.bf16.msra.mxu0 0
      %611 = vmatprep.subr.bf16.mxu0 0
      %612 = vmatpush1.bf16.msra.mxu0 0
      %613 = vmatprep.subr.bf16.mxu0 0
      %614 = vmatpush1.bf16.msra.mxu0 0
      %615 = vmatprep.subr.bf16.mxu0 0
      %616 = vmatpush1.bf16.msra.mxu0 0
      %617 = vmatprep.subr.bf16.mxu0 0
      %618 = vmatpush1.bf16.msra.mxu0 0
      %619 = vmatprep.mubr.bf16.mxu0 0
      %620 = vmatmul.mubr.bf16.gmra.mrb[0].mxu0 %v535
      %v621 = vpop.f32.mrb[0].mxu0
      %v622 = vadd.f32 0.0, %v621
      %v623 = vpop.f32.mrb[0].mxu0
      %v624 = vpop.f32.mrb[0].mxu0
      %v625 = vadd.f32 0.0, %v624
      %v626 = vpop.f32.mrb[0].mxu0
      %627 = vmatprep.mubr.bf16.mxu0 0
      %628 = vmatmul.mubr.bf16.gmra.mrb[0].mxu0 %v536
      %v629 = vpop.f32.mrb[0].mxu0
      %v630 = vadd.f32 0.0, %v629
      %v631 = vpop.f32.mrb[0].mxu0
      %v632 = vpop.f32.mrb[0].mxu0
      %v633 = vpop.f32.mrb[0].mxu0
      %634 = vdwg.mxu0
      %v635 = vld [vmem:[%s492] sm:$0xff]
      %v636 = vld [vmem:[%s492 + $0x8] sm:$0xff]
      %v637 = vld [vmem:[%s492 + $0x10] sm:$0xff]
      %vm638 = vcmp.gt.f32.partialorder %v635, 0.0
      %vm639 = vcmp.gt.f32.partialorder %v636, 0.0
      %vm640 = vcmp.gt.f32.partialorder %v637, 0.0
      %v641 = vld [vmem:[%s6] sm:$0x1]
      %v642 = vsel %vm638, 1, 0
      %v643 = vsel %vm639, 1, 0
      %v644 = vsel %vm640, 1, 0
      %645 = vset.pattern.permute.xlu0 0
      %646 = vperm.xlu0 %645, %v642
      %v647 = vpop.permute.xlu0 %646
      %648 = vset.pattern.permute.xlu0 0
      %649 = vperm.xlu0 %648, %v643
      %v650 = vpop.permute.xlu0 %649
      %651 = vset.pattern.permute.xlu0 0
      %652 = vperm.xlu0 %651, %v644
      %v653 = vpop.permute.xlu0 %652
      %vm654 = vcmp.eq.s32.totalorder %v647, 1
      %vm655 = vcmp.eq.s32.totalorder %v650, 1
      %vm656 = vcmp.eq.s32.totalorder %v653, 1
      %v658 = vlaneseq
      %v659 = vshrl.u32 %v658, 7
      %v660 = vsub.s32 0, %v659
      %v661 = vrot.slane %v641, %v660
      %v663 = vsel %vm654, %v622, %v661
      %v664 = vsel %vm655, %v625, %v661
      %v665 = vsel %vm656, %v630, %v661
      %v666 = vld [vmem:[%s452] sm:$0xf]
      %v667 = vld [vmem:[%s452 + $0x4] sm:$0xf]
      %v668 = vld [vmem:[%s452 + $0x8] sm:$0xf]
      %v669 = vunpack.c.l.bf16 %v666
      %v670 = vunpack.c.l.bf16 %v667
      %v671 = vunpack.c.l.bf16 %v668
      %v672 = vld [vmem:[%s462] sm:$0xf]
      %v673 = vld [vmem:[%s462 + $0x4] sm:$0xf]
      %v674 = vld [vmem:[%s462 + $0x8] sm:$0xf]
      %v675 = vunpack.c.l.bf16 %v672
      %v676 = vunpack.c.l.bf16 %v673
      %v677 = vunpack.c.l.bf16 %v674
      %v678 = vmul.f32 %v669, %v675
      %v679 = vmul.f32 %v670, %v676
      %v680 = vmul.f32 %v671, %v677
      %v681 = vmul.f32 %v678, %v663
      %v682 = vmul.f32 %v679, %v664
      %v683 = vmul.f32 %v680, %v665
      %v684 = vld [vmem:[%s482] sm:$0xff]
      %v685 = vld [vmem:[%s482 + $0x8] sm:$0xff]
      %v686 = vld [vmem:[%s482 + $0x10] sm:$0xff]
      %688 = vset.pattern.permute.xlu0 0
      %689 = vperm.xlu0 %688, %v684
      %v690 = vpop.permute.xlu0 %689
      %693 = vset.pattern.permute.xlu0 0
      %694 = vperm.xlu0 %693, %v685
      %v695 = vpop.permute.xlu0 %694
      %698 = vset.pattern.permute.xlu0 0
      %699 = vperm.xlu0 %698, %v686
      %v700 = vpop.permute.xlu0 %699
      %v702 = vmul.f32 %v681, %v690
      %v703 = vmul.f32 %v682, %v695
      %v704 = vmul.f32 %v683, %v700
      %v705 = vpack.c.bf16 %v703, %v702
      %v706 = vpack.c.bf16 %v704, %v704
      %v707 = vld [vmem:[%s498] sm:$0xf]
      %v708 = vld [vmem:[%s498 + $0x4] sm:$0xf]
      %v709 = vld [vmem:[%s498 + $0x8] sm:$0xf]
      %v710 = vld [vmem:[%s498 + $0xc] sm:$0xf]
      %v711 = vld [vmem:[%s498 + $0x10] sm:$0xf]
      %v712 = vld [vmem:[%s498 + $0x14] sm:$0xf]
      %v713 = vld [vmem:[%s498 + $0x18] sm:$0xf]
      %v714 = vld [vmem:[%s498 + $0x1c] sm:$0xf]
      %v715 = vld [vmem:[%s498 + $0x20] sm:$0xf]
      %v716 = vld [vmem:[%s498 + $0x24] sm:$0xf]
      %v717 = vld [vmem:[%s498 + $0x28] sm:$0xf]
      %v718 = vld [vmem:[%s498 + $0x2c] sm:$0xf]
      %v719 = vld [vmem:[%s498 + $0x30] sm:$0xf]
      %v720 = vld [vmem:[%s498 + $0x34] sm:$0xf]
      %v721 = vld [vmem:[%s498 + $0x38] sm:$0xf]
      %v722 = vld [vmem:[%s498 + $0x3c] sm:$0xf]
      %v739 = vunpack.c.l.b16 %v707
      %v740 = vunpack.c.l.b16 %v708
      %v741 = vunpack.c.l.b16 %v709
      %v742 = vunpack.c.l.b16 %v710
      %v743 = vunpack.c.l.b16 %v711
      %v744 = vunpack.c.l.b16 %v712
      %v745 = vunpack.c.l.b16 %v713
      %v746 = vunpack.c.l.b16 %v714
      %v747 = vunpack.c.l.b16 %v715
      %v748 = vunpack.c.l.b16 %v716
      %v749 = vunpack.c.l.b16 %v717
      %v750 = vunpack.c.l.b16 %v718
      %v751 = vunpack.c.l.b16 %v719
      %v752 = vunpack.c.l.b16 %v720
      %v753 = vunpack.c.l.b16 %v721
      %v754 = vunpack.c.l.b16 %v722
      %v755 = vpack.c.b16 %v740, %v739
      %v756 = vpack.c.b16 %v742, %v741
      %v757 = vpack.c.b16 %v744, %v743
      %v758 = vpack.c.b16 %v746, %v745
      %v759 = vpack.c.b16 %v748, %v747
      %v760 = vpack.c.b16 %v750, %v749
      %v761 = vpack.c.b16 %v752, %v751
      %v762 = vpack.c.b16 %v754, %v753
      %771 = vmatprep.subr.bf16.mxu0 0
      %772 = vmatpush1.bf16.msra.mxu0 %v755
      %773 = vmatprep.subr.bf16.mxu0 0
      %774 = vmatpush1.bf16.msra.mxu0 %v756
      %775 = vmatprep.subr.bf16.mxu0 0
      %776 = vmatpush1.bf16.msra.mxu0 %v757
      %777 = vmatprep.subr.bf16.mxu0 0
      %778 = vmatpush1.bf16.msra.mxu0 %v758
      %779 = vmatprep.subr.bf16.mxu0 0
      %780 = vmatpush1.bf16.msra.mxu0 %v759
      %781 = vmatprep.subr.bf16.mxu0 0
      %782 = vmatpush1.bf16.msra.mxu0 %v760
      %783 = vmatprep.subr.bf16.mxu0 0
      %784 = vmatpush1.bf16.msra.mxu0 %v761
      %785 = vmatprep.subr.bf16.mxu0 0
      %786 = vmatpush1.bf16.msra.mxu0 %v762
      %787 = vmatprep.subr.bf16.mxu0 0
      %788 = vmatpush1.bf16.msra.mxu0 0
      %789 = vmatprep.subr.bf16.mxu0 0
      %790 = vmatpush1.bf16.msra.mxu0 0
      %791 = vmatprep.subr.bf16.mxu0 0
      %792 = vmatpush1.bf16.msra.mxu0 0
      %793 = vmatprep.subr.bf16.mxu0 0
      %794 = vmatpush1.bf16.msra.mxu0 0
      %795 = vmatprep.subr.bf16.mxu0 0
      %796 = vmatpush1.bf16.msra.mxu0 0
      %797 = vmatprep.subr.bf16.mxu0 0
      %798 = vmatpush1.bf16.msra.mxu0 0
      %799 = vmatprep.subr.bf16.mxu0 0
      %800 = vmatpush1.bf16.msra.mxu0 0
      %801 = vmatprep.subr.bf16.mxu0 0
      %802 = vmatpush1.bf16.msra.mxu0 0
      %803 = vmatprep.mubr.bf16.mxu0 0
      %804 = vmatmul.mubr.bf16.gmra.mrb[0].mxu0 %v705
      %v805 = vpop.f32.mrb[0].mxu0
      %v806 = vadd.f32 0.0, %v805
      %v807 = vpop.f32.mrb[0].mxu0
      %v808 = vpop.f32.mrb[0].mxu0
      %v809 = vadd.f32 0.0, %v808
      %v810 = vpop.f32.mrb[0].mxu0
      %811 = vmatprep.mubr.bf16.mxu0 0
      %812 = vmatmul.mubr.bf16.gmra.mrb[0].mxu0 %v706
      %v813 = vpop.f32.mrb[0].mxu0
      %v814 = vadd.f32 0.0, %v813
      %v815 = vpop.f32.mrb[0].mxu0
      %v816 = vpop.f32.mrb[0].mxu0
      %v817 = vpop.f32.mrb[0].mxu0
      %818 = vdwg.mxu0
      %819 = vst [vmem:[%s507] sm:$0xff] %v806
      %820 = vst [vmem:[%s507 + $0x8] sm:$0xff] %v809
      %821 = vst [vmem:[%s507 + $0x10] sm:$0xff] %v814
      %s822 = smul.u32 3, %s24
      %p823 = scmp.lt.s32.totalorder %s23, 1
      %s824 = scalar_select %p823, %s23, 1
      %p825 = scmp.lt.s32.totalorder %s822, 5
      %s826 = scalar_select %p825, %s822, 5
      %s827 = smul.addr %s824, 6
      %s828 = sadd.s32 %s826, %s827
      %s829 = smul.addr %s828, 8
      %s830 = scalar_lea.vmem %s8, %s829
      // Predicated region
      $region53: #{stare_encoder_forward.6} parent=51 // pred_check
        %p831 = pneg %p259
      $region54: #{stare_encoder_forward.6} parent=51 // pred_check_branch
        %833 = sbr.rel (%p831) target = $region56
      $region55: #{stare_encoder_forward.6} parent=51 // pred_region
        %s834 = smul.u32 3, %s24
      $region56: #{stare_encoder_forward.6} parent=51 // pred_fallthru
        _
    $region52: #{stare_encoder_forward.6} parent=5 // pred_fallthru
      _
    %p835 = scmp.le.s32.totalorder 2, %s14
    // Predicated region
    $region57: #{stare_encoder_forward.6} parent=5 // pred_check
      %p836 = pneg %p835
    $region58: #{stare_encoder_forward.6} parent=5 // pred_check_branch
      %838 = sbr.rel (%p836) target = $region60
    $region59: #{stare_encoder_forward.6} parent=5 // pred_region
      %s839 = ssub.s32 %s14, 2
      // Predicated region
      $region61: #{stare_encoder_forward.6} parent=59 // pred_check
        %p840 = pneg %p265
      $region62: #{stare_encoder_forward.6} parent=59 // pred_check_branch
        %842 = sbr.rel (%p840) target = $region64
      $region63: #{stare_encoder_forward.6} parent=59 // pred_region
        %s843 = smul.u32 3, %s26
        %p844 = scmp.lt.s32.totalorder %s25, 1
        %s845 = scalar_select %p844, %s25, 1
        %p846 = scmp.lt.s32.totalorder %s843, 5
        %s847 = scalar_select %p846, %s843, 5
        %s848 = smul.addr %s845, 6
        %s849 = sadd.s32 %s847, %s848
        %s850 = smul.addr %s849, 8
        %s851 = scalar_lea.vmem %s8, %s850
      $region64: #{stare_encoder_forward.6} parent=59 // pred_fallthru
        _
    $region60: #{stare_encoder_forward.6} parent=5 // pred_fallthru
      _
  $region6: #{stare_encoder_forward.6} parent=0 // loop_footer
    %s18 = sadd.s32 1, %s14
  $region7: #{stare_encoder_forward.6} parent=0 // loop_footer_branch
    %13 = sbr.rel target = $region3
  $region8: #{stare_encoder_forward.6} parent=0 // loop_exit
    _

// kernel: stare_encoder_forward.7
$region0: #{stare_encoder_forward.7}
  #allocation0 [shape = 'u32[]', space=smem, size = 0x4, offset = 0x4, fixed_abs, tag = 'smem constant byte address 0x4 - core index']
  #allocation1 [shape = 'u32[144,128]{1,0:T(1,128)}', space=vmem, size = 0x12000, scoped, tag = 'internal scratch']
  %s0 = inlined_call_operand.vmem [shape: f32[64,128], index: 0, kind: input, shape index: {}]
  %s1 = inlined_call_operand.vmem [shape: bf16[64,128], index: 1, kind: input, shape index: {}]
  %s2 = inlined_call_operand.vmem [shape: bf16[1,128], index: 2, kind: input, shape index: {}]
  %s3 = inlined_call_operand.vmem [shape: bf16[128,128], index: 3, kind: input, shape index: {}]
  %s4 = inlined_call_operand.vmem [shape: f32[64,128], index: 4, kind: output, shape index: {}]
  %s5 = sld [smem:[#allocation0]]
  $region49: #{stare_encoder_forward.7} parent=0
    _
  %s7 = ssub.s32 1, %s5
  %s8 = scalar_select 0, %s7, %s5
  loop: start=0, step=1, limit=4
  $region2: #{stare_encoder_forward.7} parent=0 // loop_pre_header
    _
  $region3: #{stare_encoder_forward.7} parent=0 // loop_header
    %s10 = sphi 0, %s14
    %p11 = scmp.ge.s32.totalorder %s10, 4
    %s20 = sphi 0, %s22
    %s23 = sphi 0, %s20
    %s24 = sphi 0, %s23
    %s40 = sphi 0, %s24
    %s46 = sphi 0, %s48
    %s49 = sphi 0, %s46
    %s50 = sphi 0, %s49
    %s66 = sphi 0, %s50
    %s70 = sphi 0, %s70
    %s72 = sphi 0, %s70
    %s73 = sphi 0, %s72
    %s87 = sphi 0, %s73
    %s91 = sphi 0, %s91
    %s93 = sphi 0, %s91
    %s94 = sphi 0, %s93
    %s108 = sphi 0, %s94
    %s114 = sphi 0, %s116
    %s117 = sphi 0, %s114
    %s118 = sphi 0, %s117
    %s134 = sphi 0, %s118
  $region4: #{stare_encoder_forward.7} parent=0 // loop_header_branch
    %13 = sbr.rel (%p11) target = $region8
  $region5: #{stare_encoder_forward.7} parent=0 // loop_body
    %s15 = ssub.s32 %s10, 1
    %s16 = ssub.s32 %s10, 2
    %s17 = sadd.s32 %s10, 1
    %s18 = ssub.s32 %s10, %s17
    %p19 = scmp.eq.s32.totalorder %s18, 0
    %s21 = sadd.s32 %s20, 1
    %s22 = scalar_select %p19, %s20, %s21
    %p25 = pneg %p19
    %p26 = scmp.eq.s32.totalorder %s10, 1
    %p27 = por %p25, %p26
    %p28 = scmp.ne.s32.totalorder %s20, %s23
    %p29 = scmp.eq.s32.totalorder %s10, 0
    %p30 = por %p28, %p29
    %p31 = scmp.ne.s32.totalorder %s20, %s23
    %p32 = scmp.eq.s32.totalorder %s15, 1
    %p33 = por %p31, %p32
    %p34 = scmp.ne.s32.totalorder %s23, %s24
    %p35 = scmp.eq.s32.totalorder %s15, 0
    %p36 = por %p34, %p35
    %p37 = scmp.ne.s32.totalorder %s23, %s24
    %p38 = scmp.eq.s32.totalorder %s16, 1
    %p39 = por %p37, %p38
    %p41 = scmp.ne.s32.totalorder %s24, %s40
    %p42 = scmp.eq.s32.totalorder %s16, 0
    %p43 = por %p41, %p42
    %s44 = ssub.s32 %s10, %s17
    %p45 = scmp.eq.s32.totalorder %s44, 0
    %s47 = sadd.s32 %s46, 1
    %s48 = scalar_select %p45, %s46, %s47
    %p51 = pneg %p45
    %p52 = scmp.eq.s32.totalorder %s10, 1
    %p53 = por %p51, %p52
    %p54 = scmp.ne.s32.totalorder %s46, %s49
    %p55 = scmp.eq.s32.totalorder %s10, 0
    %p56 = por %p54, %p55
    %p57 = scmp.ne.s32.totalorder %s46, %s49
    %p58 = scmp.eq.s32.totalorder %s15, 1
    %p59 = por %p57, %p58
    %p60 = scmp.ne.s32.totalorder %s49, %s50
    %p61 = scmp.eq.s32.totalorder %s15, 0
    %p62 = por %p60, %p61
    %p63 = scmp.ne.s32.totalorder %s49, %s50
    %p64 = scmp.eq.s32.totalorder %s16, 1
    %p65 = por %p63, %p64
    %p67 = scmp.ne.s32.totalorder %s50, %s66
    %p68 = scmp.eq.s32.totalorder %s16, 0
    %p69 = por %p67, %p68
    %s71 = sadd.s32 %s70, 1
    %p74 = scmp.eq.s32.totalorder %s10, 1
    %p75 = scmp.ne.s32.totalorder %s70, %s72
    %p76 = scmp.eq.s32.totalorder %s10, 0
    %p77 = por %p75, %p76
    %p78 = scmp.ne.s32.totalorder %s70, %s72
    %p79 = scmp.eq.s32.totalorder %s15, 1
    %p80 = por %p78, %p79
    %p81 = scmp.ne.s32.totalorder %s72, %s73
    %p82 = scmp.eq.s32.totalorder %s15, 0
    %p83 = por %p81, %p82
    %p84 = scmp.ne.s32.totalorder %s72, %s73
    %p85 = scmp.eq.s32.totalorder %s16, 1
    %p86 = por %p84, %p85
    %p88 = scmp.ne.s32.totalorder %s73, %s87
    %p89 = scmp.eq.s32.totalorder %s16, 0
    %p90 = por %p88, %p89
    %s92 = sadd.s32 %s91, 1
    %p95 = scmp.eq.s32.totalorder %s10, 1
    %p96 = scmp.ne.s32.totalorder %s91, %s93
    %p97 = scmp.eq.s32.totalorder %s10, 0
    %p98 = por %p96, %p97
    %p99 = scmp.ne.s32.totalorder %s91, %s93
    %p100 = scmp.eq.s32.totalorder %s15, 1
    %p101 = por %p99, %p100
    %p102 = scmp.ne.s32.totalorder %s93, %s94
    %p103 = scmp.eq.s32.totalorder %s15, 0
    %p104 = por %p102, %p103
    %p105 = scmp.ne.s32.totalorder %s93, %s94
    %p106 = scmp.eq.s32.totalorder %s16, 1
    %p107 = por %p105, %p106
    %p109 = scmp.ne.s32.totalorder %s94, %s108
    %p110 = scmp.eq.s32.totalorder %s16, 0
    %p111 = por %p109, %p110
    %s112 = ssub.s32 %s10, %s17
    %p113 = scmp.eq.s32.totalorder %s112, 0
    %s115 = sadd.s32 %s114, 1
    %s116 = scalar_select %p113, %s114, %s115
    %p119 = pneg %p113
    %p120 = scmp.eq.s32.totalorder %s10, 1
    %p121 = por %p119, %p120
    %p122 = scmp.ne.s32.totalorder %s114, %s117
    %p123 = scmp.eq.s32.totalorder %s10, 0
    %p124 = por %p122, %p123
    %p125 = scmp.ne.s32.totalorder %s114, %s117
    %p126 = scmp.eq.s32.totalorder %s15, 1
    %p127 = por %p125, %p126
    %p128 = scmp.ne.s32.totalorder %s117, %s118
    %p129 = scmp.eq.s32.totalorder %s15, 0
    %p130 = por %p128, %p129
    %p131 = scmp.ne.s32.totalorder %s117, %s118
    %p132 = scmp.eq.s32.totalorder %s16, 1
    %p133 = por %p131, %p132
    %p135 = scmp.ne.s32.totalorder %s118, %s134
    %p136 = scmp.eq.s32.totalorder %s16, 0
    %p137 = por %p135, %p136
    %p138 = scmp.le.s32.totalorder 1, %s10
    %p139 = scmp.lt.s32.totalorder %s10, 3
    %p140 = pnand %p138, %p139
    %p141 = pneg %p140
    // Predicated region
    $region9: #{stare_encoder_forward.7} parent=5 // pred_check
      _
    $region10: #{stare_encoder_forward.7} parent=5 // pred_check_branch
      %143 = sbr.rel (%p140) target = $region12
    $region11: #{stare_encoder_forward.7} parent=5 // pred_region
      %s144 = ssub.s32 %s10, 1
      // Predicated region
      $region13: #{stare_encoder_forward.7} parent=11 // pred_check
        %p145 = pneg %p83
      $region14: #{stare_encoder_forward.7} parent=11 // pred_check_branch
        %147 = sbr.rel (%p145) target = $region16
      $region15: #{stare_encoder_forward.7} parent=11 // pred_region
        _
      $region16: #{stare_encoder_forward.7} parent=11 // pred_fallthru
        _
      // Predicated region
      $region17: #{stare_encoder_forward.7} parent=11 // pred_check
        %p148 = pneg %p104
      $region18: #{stare_encoder_forward.7} parent=11 // pred_check_branch
        %150 = sbr.rel (%p148) target = $region20
      $region19: #{stare_encoder_forward.7} parent=11 // pred_region
        _
      $region20: #{stare_encoder_forward.7} parent=11 // pred_fallthru
        _
    $region12: #{stare_encoder_forward.7} parent=5 // pred_fallthru
      _
    %p151 = scmp.lt.s32.totalorder %s10, 2
    // Predicated region
    $region21: #{stare_encoder_forward.7} parent=5 // pred_check
      %p152 = pneg %p151
    $region22: #{stare_encoder_forward.7} parent=5 // pred_check_branch
      %154 = sbr.rel (%p152) target = $region24
    $region23: #{stare_encoder_forward.7} parent=5 // pred_region
      // Predicated region
      $region25: #{stare_encoder_forward.7} parent=23 // pred_check
        %p155 = pneg %p30
      $region26: #{stare_encoder_forward.7} parent=23 // pred_check_branch
        %157 = sbr.rel (%p155) target = $region28
      $region27: #{stare_encoder_forward.7} parent=23 // pred_region
        %s158 = smul.u32 4, %s10
        %p159 = scmp.lt.s32.totalorder %s158, 7
        %s160 = scalar_select %p159, %s158, 7
        %s161 = smul.addr %s160, 8
        %s162 = scalar_lea.vmem %s0, %s161
        %s163 = smul.u32 4, %s10
      $region28: #{stare_encoder_forward.7} parent=23 // pred_fallthru
        _
      // Predicated region
      $region29: #{stare_encoder_forward.7} parent=23 // pred_check
        %p164 = pneg %p56
      $region30: #{stare_encoder_forward.7} parent=23 // pred_check_branch
        %166 = sbr.rel (%p164) target = $region32
      $region31: #{stare_encoder_forward.7} parent=23 // pred_region
        %s167 = smul.u32 4, %s10
        %p168 = scmp.lt.s32.totalorder %s167, 7
        %s169 = scalar_select %p168, %s167, 7
        %s170 = smul.addr %s169, 4
        %s171 = scalar_lea.vmem %s1, %s170
        %s172 = smul.u32 4, %s10
      $region32: #{stare_encoder_forward.7} parent=23 // pred_fallthru
        _
    $region24: #{stare_encoder_forward.7} parent=5 // pred_fallthru
      _
    %p173 = scmp.le.s32.totalorder 1, %s10
    %p174 = scmp.lt.s32.totalorder %s10, 3
    %p175 = pnand %p173, %p174
    %p176 = pneg %p175
    // Predicated region
    $region33: #{stare_encoder_forward.7} parent=5 // pred_check
      _
    $region34: #{stare_encoder_forward.7} parent=5 // pred_check_branch
      %178 = sbr.rel (%p175) target = $region36
    $region35: #{stare_encoder_forward.7} parent=5 // pred_region
      %s179 = ssub.s32 %s10, 1
      %s180 = smul.u32 4, %s15
      %p181 = scmp.lt.s32.totalorder %s180, 7
      %s182 = scalar_select %p181, %s180, 7
      %s183 = smul.addr %s182, 8
      %s184 = scalar_lea.vmem %s0, %s183
      %p185 = pneg %p36
      %p186 = pneg %p33
      %s187 = smul.u32 4, %s15
      %p188 = scmp.lt.s32.totalorder %s187, 7
      %s189 = scalar_select %p188, %s187, 7
      %s190 = smul.addr %s189, 4
      %s191 = scalar_lea.vmem %s1, %s190
      %p192 = pneg %p62
      %p193 = pneg %p59
      %p194 = pneg %p83
      %p195 = pneg %p80
      %p196 = pneg %p104
      %p197 = pneg %p101
      %p198 = pneg %p130
      %p199 = pneg %p127
      %s200 = smul.u32 4, %s15
      %p201 = scmp.lt.s32.totalorder %s200, 7
      %s202 = scalar_select %p201, %s200, 7
      %s203 = smul.addr %s202, 8
      %s204 = scalar_lea.vmem %s4, %s203
      %s205 = smul.u32 4, %s15
      %p206 = scmp.lt.s32.totalorder %s205, 7
      %s207 = scalar_select %p206, %s205, 7
      %s208 = smul.addr %s207, 8
      %s209 = scalar_lea.vmem %s0, %s208
      %s210 = smul.u32 4, %s15
      %s211 = smul.u32 4, %s15
      %p212 = scmp.lt.s32.totalorder %s211, 7
      %s213 = scalar_select %p212, %s211, 7
      %s214 = smul.addr %s213, 4
      %s215 = scalar_lea.vmem %s1, %s214
      %s216 = smul.u32 4, %s15
      %s217 = smul.u32 4, %s15
      %p218 = scmp.lt.s32.totalorder %s217, 7
      %s219 = scalar_select %p218, %s217, 7
      %s220 = smul.addr %s219, 8
      %s221 = scalar_lea.vmem %s4, %s220
      %s222 = smul.u32 4, %s15
      %v224 = vld [vmem:[%s215] sm:$0xf]
      %v225 = vld [vmem:[%s215 + $0x4] sm:$0xf]
      %v226 = vld [vmem:[%s215 + $0x8] sm:$0xf]
      %v227 = vld [vmem:[%s215 + $0xc] sm:$0xf]
      %v228 = vld [vmem:[%s2] sm:$0x1]
      %v230 = vpack.i.b16 %v228, %v228
      %v232 = vlaneseq
      %v233 = vshrl.u32 %v232, 7
      %v234 = vsub.s32 0, %v233
      %v235 = vrot.slane %v230, %v234
      %v237 = vunpack.c.l.b16 %v235
      %v238 = vpack.c.b16 %v237, %v237
      %v240 = vmul.bf16 %v224, %v238
      %v241 = vmul.bf16 %v225, %v238
      %v242 = vmul.bf16 %v226, %v238
      %v243 = vmul.bf16 %v227, %v238
      %v244 = vld [vmem:[%s3] sm:$0xf]
      %v245 = vld [vmem:[%s3 + $0x4] sm:$0xf]
      %v246 = vld [vmem:[%s3 + $0x8] sm:$0xf]
      %v247 = vld [vmem:[%s3 + $0xc] sm:$0xf]
      %v248 = vld [vmem:[%s3 + $0x10] sm:$0xf]
      %v249 = vld [vmem:[%s3 + $0x14] sm:$0xf]
      %v250 = vld [vmem:[%s3 + $0x18] sm:$0xf]
      %v251 = vld [vmem:[%s3 + $0x1c] sm:$0xf]
      %v252 = vld [vmem:[%s3 + $0x20] sm:$0xf]
      %v253 = vld [vmem:[%s3 + $0x24] sm:$0xf]
      %v254 = vld [vmem:[%s3 + $0x28] sm:$0xf]
      %v255 = vld [vmem:[%s3 + $0x2c] sm:$0xf]
      %v256 = vld [vmem:[%s3 + $0x30] sm:$0xf]
      %v257 = vld [vmem:[%s3 + $0x34] sm:$0xf]
      %v258 = vld [vmem:[%s3 + $0x38] sm:$0xf]
      %v259 = vld [vmem:[%s3 + $0x3c] sm:$0xf]
      %v264 = vunpack.c.l.b16 %v240
      %v265 = vunpack.c.l.b16 %v241
      %v266 = vunpack.c.l.b16 %v242
      %v267 = vunpack.c.l.b16 %v243
      %v268 = vpack.c.b16 %v265, %v264
      %v269 = vpack.c.b16 %v267, %v266
      %v288 = vunpack.c.l.b16 %v244
      %v289 = vunpack.c.l.b16 %v245
      %v290 = vunpack.c.l.b16 %v246
      %v291 = vunpack.c.l.b16 %v247
      %v292 = vunpack.c.l.b16 %v248
      %v293 = vunpack.c.l.b16 %v249
      %v294 = vunpack.c.l.b16 %v250
      %v295 = vunpack.c.l.b16 %v251
      %v296 = vunpack.c.l.b16 %v252
      %v297 = vunpack.c.l.b16 %v253
      %v298 = vunpack.c.l.b16 %v254
      %v299 = vunpack.c.l.b16 %v255
      %v300 = vunpack.c.l.b16 %v256
      %v301 = vunpack.c.l.b16 %v257
      %v302 = vunpack.c.l.b16 %v258
      %v303 = vunpack.c.l.b16 %v259
      %v304 = vpack.c.b16 %v289, %v288
      %v305 = vpack.c.b16 %v291, %v290
      %v306 = vpack.c.b16 %v293, %v292
      %v307 = vpack.c.b16 %v295, %v294
      %v308 = vpack.c.b16 %v297, %v296
      %v309 = vpack.c.b16 %v299, %v298
      %v310 = vpack.c.b16 %v301, %v300
      %v311 = vpack.c.b16 %v303, %v302
      %320 = vmatprep.subr.bf16.mxu0 0
      %321 = vmatpush1.bf16.msra.mxu0 %v304
      %322 = vmatprep.subr.bf16.mxu0 0
      %323 = vmatpush1.bf16.msra.mxu0 %v305
      %324 = vmatprep.subr.bf16.mxu0 0
      %325 = vmatpush1.bf16.msra.mxu0 %v306
      %326 = vmatprep.subr.bf16.mxu0 0
      %327 = vmatpush1.bf16.msra.mxu0 %v307
      %328 = vmatprep.subr.bf16.mxu0 0
      %329 = vmatpush1.bf16.msra.mxu0 %v308
      %330 = vmatprep.subr.bf16.mxu0 0
      %331 = vmatpush1.bf16.msra.mxu0 %v309
      %332 = vmatprep.subr.bf16.mxu0 0
      %333 = vmatpush1.bf16.msra.mxu0 %v310
      %334 = vmatprep.subr.bf16.mxu0 0
      %335 = vmatpush1.bf16.msra.mxu0 %v311
      %336 = vmatprep.subr.bf16.mxu0 0
      %337 = vmatpush1.bf16.msra.mxu0 0
      %338 = vmatprep.subr.bf16.mxu0 0
      %339 = vmatpush1.bf16.msra.mxu0 0
      %340 = vmatprep.subr.bf16.mxu0 0
      %341 = vmatpush1.bf16.msra.mxu0 0
      %342 = vmatprep.subr.bf16.mxu0 0
      %343 = vmatpush1.bf16.msra.mxu0 0
      %344 = vmatprep.subr.bf16.mxu0 0
      %345 = vmatpush1.bf16.msra.mxu0 0
      %346 = vmatprep.subr.bf16.mxu0 0
      %347 = vmatpush1.bf16.msra.mxu0 0
      %348 = vmatprep.subr.bf16.mxu0 0
      %349 = vmatpush1.bf16.msra.mxu0 0
      %350 = vmatprep.subr.bf16.mxu0 0
      %351 = vmatpush1.bf16.msra.mxu0 0
      %352 = vmatprep.mubr.bf16.mxu0 0
      %353 = vmatmul.mubr.bf16.gmra.mrb[0].mxu0 %v268
      %v354 = vpop.f32.mrb[0].mxu0
      %v355 = vadd.f32 0.0, %v354
      %v356 = vpop.f32.mrb[0].mxu0
      %v357 = vpop.f32.mrb[0].mxu0
      %v358 = vadd.f32 0.0, %v357
      %v359 = vpop.f32.mrb[0].mxu0
      %360 = vmatprep.mubr.bf16.mxu0 0
      %361 = vmatmul.mubr.bf16.gmra.mrb[0].mxu0 %v269
      %v362 = vpop.f32.mrb[0].mxu0
      %v363 = vadd.f32 0.0, %v362
      %v364 = vpop.f32.mrb[0].mxu0
      %v365 = vpop.f32.mrb[0].mxu0
      %v366 = vadd.f32 0.0, %v365
      %v367 = vpop.f32.mrb[0].mxu0
      %368 = vdwg.mxu0
      %v369 = vld [vmem:[%s209] sm:$0xff]
      %v370 = vld [vmem:[%s209 + $0x8] sm:$0xff]
      %v371 = vld [vmem:[%s209 + $0x10] sm:$0xff]
      %v372 = vld [vmem:[%s209 + $0x18] sm:$0xff]
      %v373 = vadd.f32 %v369, %v355
      %v374 = vadd.f32 %v370, %v358
      %v375 = vadd.f32 %v371, %v363
      %v376 = vadd.f32 %v372, %v366
      %v377 = vmul.f32 %v373, 0.33333167
      %v378 = vmul.f32 %v374, 0.33333167
      %v379 = vmul.f32 %v375, 0.33333167
      %v380 = vmul.f32 %v376, 0.33333167
      %v381 = vtanh.pop %v377
      %v382 = vtanh.pop %v378
      %v383 = vtanh.pop %v379
      %v384 = vtanh.pop %v380
      %385 = vst [vmem:[%s221] sm:$0xff] %v381
      %386 = vst [vmem:[%s221 + $0x8] sm:$0xff] %v382
      %387 = vst [vmem:[%s221 + $0x10] sm:$0xff] %v383
      %388 = vst [vmem:[%s221 + $0x18] sm:$0xff] %v384
      %s389 = smul.u32 4, %s15
      %p390 = scmp.lt.s32.totalorder %s389, 7
      %s391 = scalar_select %p390, %s389, 7
      %s392 = smul.addr %s391, 8
      %s393 = scalar_lea.vmem %s4, %s392
      // Predicated region
      $region37: #{stare_encoder_forward.7} parent=35 // pred_check
        %p394 = pneg %p127
      $region38: #{stare_encoder_forward.7} parent=35 // pred_check_branch
        %396 = sbr.rel (%p394) target = $region40
      $region39: #{stare_encoder_forward.7} parent=35 // pred_region
        %s397 = smul.u32 4, %s15
      $region40: #{stare_encoder_forward.7} parent=35 // pred_fallthru
        _
    $region36: #{stare_encoder_forward.7} parent=5 // pred_fallthru
      _
    %p398 = scmp.le.s32.totalorder 2, %s10
    // Predicated region
    $region41: #{stare_encoder_forward.7} parent=5 // pred_check
      %p399 = pneg %p398
    $region42: #{stare_encoder_forward.7} parent=5 // pred_check_branch
      %401 = sbr.rel (%p399) target = $region44
    $region43: #{stare_encoder_forward.7} parent=5 // pred_region
      %s402 = ssub.s32 %s10, 2
      // Predicated region
      $region45: #{stare_encoder_forward.7} parent=43 // pred_check
        %p403 = pneg %p133
      $region46: #{stare_encoder_forward.7} parent=43 // pred_check_branch
        %405 = sbr.rel (%p403) target = $region48
      $region47: #{stare_encoder_forward.7} parent=43 // pred_region
        %s406 = smul.u32 4, %s16
        %p407 = scmp.lt.s32.totalorder %s406, 7
        %s408 = scalar_select %p407, %s406, 7
        %s409 = smul.addr %s408, 8
        %s410 = scalar_lea.vmem %s4, %s409
      $region48: #{stare_encoder_forward.7} parent=43 // pred_fallthru
        _
    $region44: #{stare_encoder_forward.7} parent=5 // pred_fallthru
      _
  $region6: #{stare_encoder_forward.7} parent=0 // loop_footer
    %s14 = sadd.s32 1, %s10
  $region7: #{stare_encoder_forward.7} parent=0 // loop_footer_branch
    %9 = sbr.rel target = $region3
  $region8: #{stare_encoder_forward.7} parent=0 // loop_exit
    _

</llo_original>
